<compile_context>
chip_gen: v7x
topology: tpu7x:2x2x1
jax: 0.10.0
libtpu: 0.0.40
codegen_flags: <defaults>
</compile_context>

<pallas_src>
import jax
import jax.numpy as jnp
import numpy as np
from jax import lax
from jax.experimental import pallas as pl
from jax.experimental.pallas import tpu as pltpu

# Static model dims (SimpleCNN: 3->16 conv, 16->32 conv, 32->128->1 MLP).
CIN, C1, C2, HID = 3, 16, 32, 128
TAPS = 9  # 3x3 kernels


# ---------------------------------------------------------------------------
# Fused Pallas kernel: whole SimpleCNN forward, one grid step, VMEM resident.
# ---------------------------------------------------------------------------
def _simple_cnn_kernel(cols1_ref, w1_ref, b1_ref, w2_ref, b2_ref,
                       wf1_ref, bf1_ref, wf2_ref, bf2_ref,
                       o_ref, xp2_ref, hm_ref):
    # cols1_ref : (4*B*H2*W2, 27)    conv1 im2col grouped by pool offset
    # xp2_ref   : (B, H2+2, W2+2, C1) zero-padded conv2 input   (VMEM scratch)
    # hm_ref    : (B, H3, W2, C2)     H-pooled conv2 activations (VMEM scratch)
    B, Hp2, Wp2, _ = xp2_ref.shape
    H2, W2 = Hp2 - 2, Wp2 - 2            # 8, 8
    H3, W3 = H2 // 2, W2 // 2            # 4, 4
    M1 = B * H2 * W2                     # pooled conv1 / conv2 positions

    # ---- conv1 + bias + ReLU + 2x2 max-pool: ONE matmul, max over 4 groups --
    z1 = jnp.dot(cols1_ref[...], w1_ref[...],
                 preferred_element_type=jnp.float32)             # (4*M1, C1)
    z1 = jnp.max(z1.reshape(4, M1, C1), axis=0)                  # pool (leading dim)
    p1 = jnp.maximum(z1 + b1_ref[...], 0.0)                      # (M1, C1)

    # ---- pooled conv1 -> zero-padded conv2 input (two dense stores) ---------
    xp2_ref[...] = jnp.zeros(xp2_ref.shape, xp2_ref.dtype)
    xp2_ref[:, 1:1 + H2, 1:1 + W2, :] = p1.reshape(B, H2, W2, C1)

    # ---- conv2: in-kernel im2col (lane concat of 9 taps) -> ONE K=144 matmul
    taps = []
    for kh in range(3):
        for kw in range(3):
            t = xp2_ref[:, kh:kh + H2, kw:kw + W2, :]            # (B, H2, W2, C1)
            taps.append(t.reshape(M1, C1))                       # leading-dim collapse
    im2 = jnp.concatenate(taps, axis=-1)                         # (M1, 9*C1)
    z2 = jnp.dot(im2, w2_ref[...], preferred_element_type=jnp.float32)
    y2 = jnp.maximum(z2 + b2_ref[...], 0.0)                      # (M1, C2)

    # ---- 2x2 max-pool (vectorized) + global average pool --------------------
    # H pairs sit on leading dims after a tile-preserving reshape; W pairs are
    # read back with stride-2 sublane loads (pl.ds) -- no per-position stores.
    hm_ref[...] = jnp.max(y2.reshape(B, H3, 2, W2, C2), axis=2)  # (B, H3, W2, C2)
    pooled = jnp.maximum(hm_ref[:, :, pl.ds(0, W3, 2), :],
                         hm_ref[:, :, pl.ds(1, W3, 2), :])       # (B, H3, W3, C2)
    gap = jnp.sum(pooled, axis=(1, 2)) * (1.0 / (H3 * W3))       # (B, C2)

    # ---- fc1 + ReLU + fc2 + sigmoid ------------------------------------------
    h = jnp.dot(gap, wf1_ref[...], preferred_element_type=jnp.float32) + bf1_ref[...]
    h = jnp.maximum(h, 0.0)                                      # (B, HID)
    logit = jnp.dot(h, wf2_ref[...], preferred_element_type=jnp.float32) + bf2_ref[...]
    o_ref[...] = jax.nn.sigmoid(logit).astype(o_ref.dtype)       # (B, 1)


# ---------------------------------------------------------------------------
# One-time weight re-layout (hoisted out of the per-call jit).
# ---------------------------------------------------------------------------
def pack_params(params):
    # per-tap (kh, kw, cin)-major rows matching the im2col channel order
    w1col = jnp.transpose(params["conv1_w"], (2, 3, 1, 0)).reshape(TAPS * CIN, C1)
    w2col = jnp.transpose(params["conv2_w"], (2, 3, 1, 0)).reshape(TAPS * C1, C2)
    return {
        "w1col": w1col, "b1": params["conv1_b"][None, :],
        "w2col": w2col, "b2": params["conv2_b"][None, :],
        "wf1": params["fc1_w"].T, "bf1": params["fc1_b"][None, :],
        "wf2": params["fc2_w"].T, "bf2": params["fc2_b"][None, :],
    }


# ---------------------------------------------------------------------------
# Wrapper: layout plumbing only (NHWC transpose, pad, grouped im2col), 1 kernel.
# ---------------------------------------------------------------------------
@jax.jit
def simple_cnn_forward(x_nchw, packed):
    x = jnp.transpose(x_nchw, (0, 2, 3, 1))          # NCHW -> NHWC
    B, H, W, Cin = x.shape
    assert Cin == CIN and H % 4 == 0 and W % 4 == 0, "kernel assumes two even pools"
    H2, W2 = H // 2, W // 2
    H3, W3 = H2 // 2, W2 // 2

    xpad = jnp.pad(x, ((0, 0), (1, 1), (1, 1), (0, 0)))

    # Grouped conv1 im2col: group g = 2*dh + dw holds the rows for conv1 output
    # position (2i+dh, 2j+dw); max over g inside the kernel == 2x2 max-pool.
    groups = []
    for dh in range(2):
        for dw in range(2):
            tap_slices = []
            for kh in range(3):
                for kw in range(3):
                    tap_slices.append(
                        xpad[:, dh + kh:dh + kh + H:2, dw + kw:dw + kw + W:2, :])
            groups.append(jnp.concatenate(tap_slices, axis=-1))   # (B, H2, W2, 27)
    cols1 = jnp.stack(groups, axis=0).reshape(4 * B * H2 * W2, TAPS * CIN)

    return pl.pallas_call(
        _simple_cnn_kernel,
        out_shape=jax.ShapeDtypeStruct((B, 1), jnp.float32),
        grid_spec=pltpu.PrefetchScalarGridSpec(
            num_scalar_prefetch=0,
            grid=(1,),
            in_specs=[
                pl.BlockSpec((4 * B * H2 * W2, TAPS * CIN), lambda i: (0, 0)),
                pl.BlockSpec((TAPS * CIN, C1), lambda i: (0, 0)),
                pl.BlockSpec((1, C1), lambda i: (0, 0)),
                pl.BlockSpec((TAPS * C1, C2), lambda i: (0, 0)),
                pl.BlockSpec((1, C2), lambda i: (0, 0)),
                pl.BlockSpec((C2, HID), lambda i: (0, 0)),
                pl.BlockSpec((1, HID), lambda i: (0, 0)),
                pl.BlockSpec((HID, 1), lambda i: (0, 0)),
                pl.BlockSpec((1, 1), lambda i: (0, 0)),
            ],
            out_specs=pl.BlockSpec((B, 1), lambda i: (0, 0)),
            scratch_shapes=[
                pltpu.VMEM((B, H2 + 2, W2 + 2, C1), jnp.float32),  # padded conv2 input
                pltpu.VMEM((B, H3, W2, C2), jnp.float32),          # H-pooled conv2 acts
            ],
        ),
        compiler_params=pltpu.CompilerParams(
            dimension_semantics=("arbitrary",)),
    )(cols1, packed["w1col"], packed["b1"], packed["w2col"], packed["b2"],
      packed["wf1"], packed["bf1"], packed["wf2"], packed["bf2"])


# ---------------------------------------------------------------------------
# Deterministic parameter init (PyTorch shapes) + pure-JAX reference
# ---------------------------------------------------------------------------
def init_params(key):
    ks = jax.random.split(key, 8)

    def u(k, shape, fan_in):
        bound = 1.0 / (fan_in ** 0.5)
        return jax.random.uniform(k, shape, jnp.float32, -bound, bound)

    return {
        "conv1_w": u(ks[0], (16, 3, 3, 3), 3 * 9),
        "conv1_b": u(ks[1], (16,), 3 * 9),
        "conv2_w": u(ks[2], (32, 16, 3, 3), 16 * 9),
        "conv2_b": u(ks[3], (32,), 16 * 9),
        "fc1_w":   u(ks[4], (128, 32), 32),
        "fc1_b":   u(ks[5], (128,), 32),
        "fc2_w":   u(ks[6], (1, 128), 128),
        "fc2_b":   u(ks[7], (1,), 128),
    }


def reference_forward(x_nchw, P):
    """Pure-JAX (lax.conv) reference mimicking the PyTorch module."""
    def conv(x, w, b):
        y = lax.conv_general_dilated(
            x, w, (1, 1), ((1, 1), (1, 1)),
            dimension_numbers=("NCHW", "OIHW", "NCHW"),
            precision=lax.Precision.HIGHEST)
        return jnp.maximum(y + b[None, :, None, None], 0.0)

    def pool(x):
        return lax.reduce_window(x, -jnp.inf, lax.max,
                                 (1, 1, 2, 2), (1, 1, 2, 2), "VALID")

    y = pool(conv(x_nchw, P["conv1_w"], P["conv1_b"]))
    y = pool(conv(y, P["conv2_w"], P["conv2_b"]))
    y = jnp.mean(y, axis=(2, 3))                        # (B, 32)
    y = jnp.maximum(y @ P["fc1_w"].T + P["fc1_b"], 0.0)
    return jax.nn.sigmoid(y @ P["fc2_w"].T + P["fc2_b"])


if __name__ == "__main__":
    key = jax.random.PRNGKey(0)
    kp, kx = jax.random.split(key)
    params = init_params(kp)
    packed = pack_params(params)                          # one-time re-layout
    x = jax.random.normal(kx, (2, 3, 16, 16), jnp.float32)   # NCHW, like PyTorch

    out = jax.block_until_ready(simple_cnn_forward(x, packed))
    assert out.shape == (2, 1) and out.dtype == jnp.float32

    ref = jax.block_until_ready(reference_forward(x, params))
    np.testing.assert_allclose(np.asarray(out), np.asarray(ref), rtol=1e-3, atol=1e-3)

    print("KERNEL_OK")
</pallas_src>

<mosaic_0001>
module attributes {stable_mosaic.version = 11 : i64} {
  func.func @_simple_cnn_kernel(%arg0: i32, %arg1: memref<512x27xf32, #tpu.memory_space<vmem>>, %arg2: memref<27x16xf32, #tpu.memory_space<vmem>>, %arg3: memref<1x16xf32, #tpu.memory_space<vmem>>, %arg4: memref<144x32xf32, #tpu.memory_space<vmem>>, %arg5: memref<1x32xf32, #tpu.memory_space<vmem>>, %arg6: memref<32x128xf32, #tpu.memory_space<vmem>>, %arg7: memref<1x128xf32, #tpu.memory_space<vmem>>, %arg8: memref<128x1xf32, #tpu.memory_space<vmem>>, %arg9: memref<1x1xf32, #tpu.memory_space<vmem>>, %arg10: memref<2x1xf32, #tpu.memory_space<vmem>>, %arg11: memref<2x10x10x16xf32, #tpu.memory_space<vmem>>, %arg12: memref<2x4x8x32xf32, #tpu.memory_space<vmem>>) attributes {dimension_semantics = [#tpu.dimension_semantics<arbitrary>], iteration_bounds = array<i64: 1>, scalar_prefetch = 0 : i64, scratch_operands = 2 : i64, tpu.core_type = #tpu.core_type<tc>, window_params = [{pipeline_mode = #tpu.pipeline_mode<synchronous>, transform_indices = @transform_0, window_bounds = array<i64: 512, 27>}, {pipeline_mode = #tpu.pipeline_mode<synchronous>, transform_indices = @transform_1, window_bounds = array<i64: 27, 16>}, {pipeline_mode = #tpu.pipeline_mode<synchronous>, transform_indices = @transform_2, window_bounds = array<i64: 1, 16>}, {pipeline_mode = #tpu.pipeline_mode<synchronous>, transform_indices = @transform_3, window_bounds = array<i64: 144, 32>}, {pipeline_mode = #tpu.pipeline_mode<synchronous>, transform_indices = @transform_4, window_bounds = array<i64: 1, 32>}, {pipeline_mode = #tpu.pipeline_mode<synchronous>, transform_indices = @transform_5, window_bounds = array<i64: 32, 128>}, {pipeline_mode = #tpu.pipeline_mode<synchronous>, transform_indices = @transform_6, window_bounds = array<i64: 1, 128>}, {pipeline_mode = #tpu.pipeline_mode<synchronous>, transform_indices = @transform_7, window_bounds = array<i64: 128, 1>}, {pipeline_mode = #tpu.pipeline_mode<synchronous>, transform_indices = @transform_8, window_bounds = array<i64: 1, 1>}, {pipeline_mode = #tpu.pipeline_mode<synchronous>, transform_indices = @transform_9, window_bounds = array<i64: 2, 1>}]} {
    %c0 = arith.constant 0 : index
    %c0_0 = arith.constant 0 : index
    %0 = vector.load %arg1[%c0, %c0_0] : memref<512x27xf32, #tpu.memory_space<vmem>>, vector<512x27xf32>
    %c0_1 = arith.constant 0 : index
    %c0_2 = arith.constant 0 : index
    %1 = vector.load %arg2[%c0_1, %c0_2] : memref<27x16xf32, #tpu.memory_space<vmem>>, vector<27x16xf32>
    %cst = arith.constant dense<0.000000e+00> : vector<512x16xf32>
    %2 = tpu.matmul %0, %1, %cst {dimension_numbers = #tpu.dot_dimension_numbers<[1], [0], [0], [1], [0, 0, 1, 1], [], []>} : vector<512x27xf32>, vector<27x16xf32>, vector<512x16xf32> -> vector<512x16xf32>
    %3 = vector.shape_cast %2 : vector<512x16xf32> to vector<4x128x16xf32>
    %cst_3 = arith.constant dense<0xFF800000> : vector<128x16xf32>
    %4 = vector.multi_reduction <maximumf>, %3, %cst_3 [0] : vector<4x128x16xf32> to vector<128x16xf32>
    %c0_4 = arith.constant 0 : index
    %c0_5 = arith.constant 0 : index
    %5 = vector.load %arg3[%c0_4, %c0_5] : memref<1x16xf32, #tpu.memory_space<vmem>>, vector<1x16xf32>
    %6 = vector.broadcast %5 : vector<1x16xf32> to vector<128x16xf32>
    %7 = arith.addf %4, %6 : vector<128x16xf32>
    %cst_6 = arith.constant 0.000000e+00 : f32
    %8 = vector.broadcast %cst_6 : f32 to vector<128x16xf32>
    %9 = arith.maximumf %7, %8 : vector<128x16xf32>
    %cst_7 = arith.constant 0.000000e+00 : f32
    %10 = vector.broadcast %cst_7 : f32 to vector<2x10x10x16xf32>
    %c0_8 = arith.constant 0 : index
    %c0_9 = arith.constant 0 : index
    %c0_10 = arith.constant 0 : index
    %c0_11 = arith.constant 0 : index
    %11 = vector.load %arg11[%c0_8, %c0_9, %c0_10, %c0_11] : memref<2x10x10x16xf32, #tpu.memory_space<vmem>>, vector<2x10x10x16xf32>
    tpu.vector_store %arg11[%c0_8, %c0_9, %c0_10, %c0_11], %10 {strides = array<i32>} : memref<2x10x10x16xf32, #tpu.memory_space<vmem>>, vector<2x10x10x16xf32>,
    %12 = vector.shape_cast %9 : vector<128x16xf32> to vector<2x8x8x16xf32>
    %c0_12 = arith.constant 0 : index
    %c1 = arith.constant 1 : index
    %c1_13 = arith.constant 1 : index
    %c0_14 = arith.constant 0 : index
    %13 = vector.load %arg11[%c0_12, %c1, %c1_13, %c0_14] : memref<2x10x10x16xf32, #tpu.memory_space<vmem>>, vector<2x8x8x16xf32>
    tpu.vector_store %arg11[%c0_12, %c1, %c1_13, %c0_14], %12 {strides = array<i32>} : memref<2x10x10x16xf32, #tpu.memory_space<vmem>>, vector<2x8x8x16xf32>,
    %c0_15 = arith.constant 0 : index
    %c0_16 = arith.constant 0 : index
    %c0_17 = arith.constant 0 : index
    %c0_18 = arith.constant 0 : index
    %14 = vector.load %arg11[%c0_15, %c0_16, %c0_17, %c0_18] : memref<2x10x10x16xf32, #tpu.memory_space<vmem>>, vector<2x8x8x16xf32>
    %15 = vector.shape_cast %14 : vector<2x8x8x16xf32> to vector<128x16xf32>
    %c0_19 = arith.constant 0 : index
    %c0_20 = arith.constant 0 : index
    %c1_21 = arith.constant 1 : index
    %c0_22 = arith.constant 0 : index
    %16 = vector.load %arg11[%c0_19, %c0_20, %c1_21, %c0_22] : memref<2x10x10x16xf32, #tpu.memory_space<vmem>>, vector<2x8x8x16xf32>
    %17 = vector.shape_cast %16 : vector<2x8x8x16xf32> to vector<128x16xf32>
    %c0_23 = arith.constant 0 : index
    %c0_24 = arith.constant 0 : index
    %c2 = arith.constant 2 : index
    %c0_25 = arith.constant 0 : index
    %18 = vector.load %arg11[%c0_23, %c0_24, %c2, %c0_25] : memref<2x10x10x16xf32, #tpu.memory_space<vmem>>, vector<2x8x8x16xf32>
    %19 = vector.shape_cast %18 : vector<2x8x8x16xf32> to vector<128x16xf32>
    %c0_26 = arith.constant 0 : index
    %c1_27 = arith.constant 1 : index
    %c0_28 = arith.constant 0 : index
    %c0_29 = arith.constant 0 : index
    %20 = vector.load %arg11[%c0_26, %c1_27, %c0_28, %c0_29] : memref<2x10x10x16xf32, #tpu.memory_space<vmem>>, vector<2x8x8x16xf32>
    %21 = vector.shape_cast %20 : vector<2x8x8x16xf32> to vector<128x16xf32>
    %c0_30 = arith.constant 0 : index
    %c1_31 = arith.constant 1 : index
    %c1_32 = arith.constant 1 : index
    %c0_33 = arith.constant 0 : index
    %22 = vector.load %arg11[%c0_30, %c1_31, %c1_32, %c0_33] : memref<2x10x10x16xf32, #tpu.memory_space<vmem>>, vector<2x8x8x16xf32>
    %23 = vector.shape_cast %22 : vector<2x8x8x16xf32> to vector<128x16xf32>
    %c0_34 = arith.constant 0 : index
    %c1_35 = arith.constant 1 : index
    %c2_36 = arith.constant 2 : index
    %c0_37 = arith.constant 0 : index
    %24 = vector.load %arg11[%c0_34, %c1_35, %c2_36, %c0_37] : memref<2x10x10x16xf32, #tpu.memory_space<vmem>>, vector<2x8x8x16xf32>
    %25 = vector.shape_cast %24 : vector<2x8x8x16xf32> to vector<128x16xf32>
    %c0_38 = arith.constant 0 : index
    %c2_39 = arith.constant 2 : index
    %c0_40 = arith.constant 0 : index
    %c0_41 = arith.constant 0 : index
    %26 = vector.load %arg11[%c0_38, %c2_39, %c0_40, %c0_41] : memref<2x10x10x16xf32, #tpu.memory_space<vmem>>, vector<2x8x8x16xf32>
    %27 = vector.shape_cast %26 : vector<2x8x8x16xf32> to vector<128x16xf32>
    %c0_42 = arith.constant 0 : index
    %c2_43 = arith.constant 2 : index
    %c1_44 = arith.constant 1 : index
    %c0_45 = arith.constant 0 : index
    %28 = vector.load %arg11[%c0_42, %c2_43, %c1_44, %c0_45] : memref<2x10x10x16xf32, #tpu.memory_space<vmem>>, vector<2x8x8x16xf32>
    %29 = vector.shape_cast %28 : vector<2x8x8x16xf32> to vector<128x16xf32>
    %c0_46 = arith.constant 0 : index
    %c2_47 = arith.constant 2 : index
    %c2_48 = arith.constant 2 : index
    %c0_49 = arith.constant 0 : index
    %30 = vector.load %arg11[%c0_46, %c2_47, %c2_48, %c0_49] : memref<2x10x10x16xf32, #tpu.memory_space<vmem>>, vector<2x8x8x16xf32>
    %31 = vector.shape_cast %30 : vector<2x8x8x16xf32> to vector<128x16xf32>
    %32 = tpu.concatenate %15, %17, %19, %21, %23, %25, %27, %29, %31 in 1 : vector<128x16xf32>, vector<128x16xf32>, vector<128x16xf32>, vector<128x16xf32>, vector<128x16xf32>, vector<128x16xf32>, vector<128x16xf32>, vector<128x16xf32>, vector<128x16xf32> -> vector<128x144xf32>
    %c0_50 = arith.constant 0 : index
    %c0_51 = arith.constant 0 : index
    %33 = vector.load %arg4[%c0_50, %c0_51] : memref<144x32xf32, #tpu.memory_space<vmem>>, vector<144x32xf32>
    %cst_52 = arith.constant dense<0.000000e+00> : vector<128x32xf32>
    %34 = tpu.matmul %32, %33, %cst_52 {dimension_numbers = #tpu.dot_dimension_numbers<[1], [0], [0], [1], [0, 0, 1, 1], [], []>} : vector<128x144xf32>, vector<144x32xf32>, vector<128x32xf32> -> vector<128x32xf32>
    %c0_53 = arith.constant 0 : index
    %c0_54 = arith.constant 0 : index
    %35 = vector.load %arg5[%c0_53, %c0_54] : memref<1x32xf32, #tpu.memory_space<vmem>>, vector<1x32xf32>
    %36 = vector.broadcast %35 : vector<1x32xf32> to vector<128x32xf32>
    %37 = arith.addf %34, %36 : vector<128x32xf32>
    %cst_55 = arith.constant 0.000000e+00 : f32
    %38 = vector.broadcast %cst_55 : f32 to vector<128x32xf32>
    %39 = arith.maximumf %37, %38 : vector<128x32xf32>
    %40 = vector.shape_cast %39 : vector<128x32xf32> to vector<2x4x2x8x32xf32>
    %cst_56 = arith.constant dense<0xFF800000> : vector<2x4x8x32xf32>
    %41 = vector.multi_reduction <maximumf>, %40, %cst_56 [2] : vector<2x4x2x8x32xf32> to vector<2x4x8x32xf32>
    %c0_57 = arith.constant 0 : index
    %c0_58 = arith.constant 0 : index
    %c0_59 = arith.constant 0 : index
    %c0_60 = arith.constant 0 : index
    %42 = vector.load %arg12[%c0_57, %c0_58, %c0_59, %c0_60] : memref<2x4x8x32xf32, #tpu.memory_space<vmem>>, vector<2x4x8x32xf32>
    tpu.vector_store %arg12[%c0_57, %c0_58, %c0_59, %c0_60], %41 {strides = array<i32>} : memref<2x4x8x32xf32, #tpu.memory_space<vmem>>, vector<2x4x8x32xf32>,
    %c0_61 = arith.constant 0 : index
    %c0_62 = arith.constant 0 : index
    %c0_63 = arith.constant 0 : index
    %c0_64 = arith.constant 0 : index
    %43 = tpu.strided_load %arg12[%c0_61, %c0_62, %c0_63, %c0_64] {strides = array<i32: 1, 1, 2, 1>} : memref<2x4x8x32xf32, #tpu.memory_space<vmem>>, vector<2x4x4x32xf32>
    %c0_65 = arith.constant 0 : index
    %c0_66 = arith.constant 0 : index
    %c1_67 = arith.constant 1 : index
    %c0_68 = arith.constant 0 : index
    %44 = tpu.strided_load %arg12[%c0_65, %c0_66, %c1_67, %c0_68] {strides = array<i32: 1, 1, 2, 1>} : memref<2x4x8x32xf32, #tpu.memory_space<vmem>>, vector<2x4x4x32xf32>
    %45 = arith.maximumf %43, %44 : vector<2x4x4x32xf32>
    %cst_69 = arith.constant dense<0.000000e+00> : vector<2x32xf32>
    %46 = vector.multi_reduction <add>, %45, %cst_69 [1, 2] : vector<2x4x4x32xf32> to vector<2x32xf32>
    %cst_70 = arith.constant 6.250000e-02 : f32
    %47 = vector.broadcast %cst_70 : f32 to vector<2x32xf32>
    %48 = arith.mulf %46, %47 : vector<2x32xf32>
    %c0_71 = arith.constant 0 : index
    %c0_72 = arith.constant 0 : index
    %49 = vector.load %arg6[%c0_71, %c0_72] : memref<32x128xf32, #tpu.memory_space<vmem>>, vector<32x128xf32>
    %cst_73 = arith.constant dense<0.000000e+00> : vector<2x128xf32>
    %50 = tpu.matmul %48, %49, %cst_73 {dimension_numbers = #tpu.dot_dimension_numbers<[1], [0], [0], [1], [0, 0, 1, 1], [], []>} : vector<2x32xf32>, vector<32x128xf32>, vector<2x128xf32> -> vector<2x128xf32>
    %c0_74 = arith.constant 0 : index
    %c0_75 = arith.constant 0 : index
    %51 = vector.load %arg7[%c0_74, %c0_75] : memref<1x128xf32, #tpu.memory_space<vmem>>, vector<1x128xf32>
    %52 = vector.broadcast %51 : vector<1x128xf32> to vector<2x128xf32>
    %53 = arith.addf %50, %52 : vector<2x128xf32>
    %cst_76 = arith.constant 0.000000e+00 : f32
    %54 = vector.broadcast %cst_76 : f32 to vector<2x128xf32>
    %55 = arith.maximumf %53, %54 : vector<2x128xf32>
    %c0_77 = arith.constant 0 : index
    %c0_78 = arith.constant 0 : index
    %56 = vector.load %arg8[%c0_77, %c0_78] : memref<128x1xf32, #tpu.memory_space<vmem>>, vector<128x1xf32>
    %cst_79 = arith.constant dense<0.000000e+00> : vector<2x1xf32>
    %57 = tpu.matmul %55, %56, %cst_79 {dimension_numbers = #tpu.dot_dimension_numbers<[1], [0], [0], [1], [0, 0, 1, 1], [], []>} : vector<2x128xf32>, vector<128x1xf32>, vector<2x1xf32> -> vector<2x1xf32>
    %c0_80 = arith.constant 0 : index
    %c0_81 = arith.constant 0 : index
    %58 = vector.load %arg9[%c0_80, %c0_81] : memref<1x1xf32, #tpu.memory_space<vmem>>, vector<1x1xf32>
    %59 = vector.broadcast %58 : vector<1x1xf32> to vector<2x1xf32>
    %60 = arith.addf %57, %59 : vector<2x1xf32>
    %61 = arith.negf %60 : vector<2x1xf32>
    %62 = math.exp %61 : vector<2x1xf32>
    %cst_82 = arith.constant 1.000000e+00 : f32
    %63 = vector.broadcast %cst_82 : f32 to vector<2x1xf32>
    %64 = arith.addf %63, %62 : vector<2x1xf32>
    %65 = arith.divf %63, %64 : vector<2x1xf32>
    %c0_83 = arith.constant 0 : index
    %c0_84 = arith.constant 0 : index
    %66 = vector.load %arg10[%c0_83, %c0_84] : memref<2x1xf32, #tpu.memory_space<vmem>>, vector<2x1xf32>
    tpu.vector_store %arg10[%c0_83, %c0_84], %65 {strides = array<i32>} : memref<2x1xf32, #tpu.memory_space<vmem>>, vector<2x1xf32>,
    return
  }
  func.func @transform_0(%arg0: i32) -> (i32, i32) {
    %c0_i32 = arith.constant 0 : i32
    %c0_i32_0 = arith.constant 0 : i32
    %c0_i32_1 = arith.constant 0 : i32
    return %c0_i32, %c0_i32_0 : i32, i32
  }
  func.func @transform_1(%arg0: i32) -> (i32, i32) {
    %c0_i32 = arith.constant 0 : i32
    %c0_i32_0 = arith.constant 0 : i32
    %c0_i32_1 = arith.constant 0 : i32
    return %c0_i32, %c0_i32_0 : i32, i32
  }
  func.func @transform_2(%arg0: i32) -> (i32, i32) {
    %c0_i32 = arith.constant 0 : i32
    %c0_i32_0 = arith.constant 0 : i32
    %c0_i32_1 = arith.constant 0 : i32
    return %c0_i32, %c0_i32_0 : i32, i32
  }
  func.func @transform_3(%arg0: i32) -> (i32, i32) {
    %c0_i32 = arith.constant 0 : i32
    %c0_i32_0 = arith.constant 0 : i32
    %c0_i32_1 = arith.constant 0 : i32
    return %c0_i32, %c0_i32_0 : i32, i32
  }
  func.func @transform_4(%arg0: i32) -> (i32, i32) {
    %c0_i32 = arith.constant 0 : i32
    %c0_i32_0 = arith.constant 0 : i32
    %c0_i32_1 = arith.constant 0 : i32
    return %c0_i32, %c0_i32_0 : i32, i32
  }
  func.func @transform_5(%arg0: i32) -> (i32, i32) {
    %c0_i32 = arith.constant 0 : i32
    %c0_i32_0 = arith.constant 0 : i32
    %c0_i32_1 = arith.constant 0 : i32
    return %c0_i32, %c0_i32_0 : i32, i32
  }
  func.func @transform_6(%arg0: i32) -> (i32, i32) {
    %c0_i32 = arith.constant 0 : i32
    %c0_i32_0 = arith.constant 0 : i32
    %c0_i32_1 = arith.constant 0 : i32
    return %c0_i32, %c0_i32_0 : i32, i32
  }
  func.func @transform_7(%arg0: i32) -> (i32, i32) {
    %c0_i32 = arith.constant 0 : i32
    %c0_i32_0 = arith.constant 0 : i32
    %c0_i32_1 = arith.constant 0 : i32
    return %c0_i32, %c0_i32_0 : i32, i32
  }
  func.func @transform_8(%arg0: i32) -> (i32, i32) {
    %c0_i32 = arith.constant 0 : i32
    %c0_i32_0 = arith.constant 0 : i32
    %c0_i32_1 = arith.constant 0 : i32
    return %c0_i32, %c0_i32_0 : i32, i32
  }
  func.func @transform_9(%arg0: i32) -> (i32, i32) {
    %c0_i32 = arith.constant 0 : i32
    %c0_i32_0 = arith.constant 0 : i32
    %c0_i32_1 = arith.constant 0 : i32
    return %c0_i32, %c0_i32_0 : i32, i32
  }
}

</mosaic_0001>

<llo_original>
// kernel: simple_cnn_forward.1
$region0: #{simple_cnn_forward.1}
  #allocation0 [shape = 'u32[]', space=smem, size = 0x4, offset = 0x4, fixed_abs, tag = 'smem constant byte address 0x4 - core index']
  #allocation1 [shape = 'u32[144,128]{1,0:T(1,128)}', space=vmem, size = 0x12000, scoped, tag = 'internal scratch']
  #allocation2 [shape = 'f32[2,10,10,16]{3,2,1,0:T(8,128)}', space=vmem, size = 0x28000, scoped, tag = 'scratch operand']
  #allocation3 [shape = 'f32[2,4,8,32]{3,2,1,0:T(8,128)}', space=vmem, size = 0x8000, scoped, tag = 'scratch operand']
  #allocation4 [shape = 'f32[1,1]{1,0:T(1,128)S(1)}', space=vmem, size = 0x200, scoped, tag = 'scoped memory for simple_cnn_forward.1']
  %s0 = inlined_call_operand.vmem [shape: f32[512,27], index: 0, kind: input, shape index: {}]
  %s1 = inlined_call_operand.vmem [shape: f32[27,16], index: 1, kind: input, shape index: {}]
  %s2 = inlined_call_operand.vmem [shape: f32[1,16], index: 2, kind: input, shape index: {}]
  %s3 = inlined_call_operand.vmem [shape: f32[144,32], index: 3, kind: input, shape index: {}]
  %s4 = inlined_call_operand.vmem [shape: f32[1,32], index: 4, kind: input, shape index: {}]
  %s5 = inlined_call_operand.vmem [shape: f32[32,128], index: 5, kind: input, shape index: {}]
  %s6 = inlined_call_operand.vmem [shape: f32[1,128], index: 6, kind: input, shape index: {}]
  %s7 = inlined_call_operand.vmem [shape: f32[128,1], index: 7, kind: input, shape index: {}]
  %s8 = inlined_call_operand.<no memory space> [shape: f32[1,1], index: 8, kind: input, shape index: {}]
  %s9 = inlined_call_operand.vmem [shape: f32[2,1], index: 9, kind: output, shape index: {}]
  %s10 = sld [smem:[#allocation0]]
  $region46: #{simple_cnn_forward.1} parent=0
    _
  %s12 = ssub.s32 1, %s10
  %s13 = scalar_select 0, %s12, %s10
  %v14 = vstv %s8
  %15 = vst [vmem:[#allocation4] sm:$0x1] %v14
  // Predicated region
  $region2: #{simple_cnn_forward.1} parent=0 // pred_check
    _
  $region3: #{simple_cnn_forward.1} parent=0 // pred_check_branch
    %17 = sbr.rel (0) target = $region5
  $region4: #{simple_cnn_forward.1} parent=0 // pred_region
    _
  $region5: #{simple_cnn_forward.1} parent=0 // pred_fallthru
    _
  // Predicated region
  $region6: #{simple_cnn_forward.1} parent=0 // pred_check
    _
  $region7: #{simple_cnn_forward.1} parent=0 // pred_check_branch
    %19 = sbr.rel (0) target = $region9
  $region8: #{simple_cnn_forward.1} parent=0 // pred_region
    _
  $region9: #{simple_cnn_forward.1} parent=0 // pred_fallthru
    _
  // Predicated region
  $region10: #{simple_cnn_forward.1} parent=0 // pred_check
    _
  $region11: #{simple_cnn_forward.1} parent=0 // pred_check_branch
    %21 = sbr.rel (0) target = $region13
  $region12: #{simple_cnn_forward.1} parent=0 // pred_region
    _
  $region13: #{simple_cnn_forward.1} parent=0 // pred_fallthru
    _
  // Predicated region
  $region14: #{simple_cnn_forward.1} parent=0 // pred_check
    _
  $region15: #{simple_cnn_forward.1} parent=0 // pred_check_branch
    %23 = sbr.rel (0) target = $region17
  $region16: #{simple_cnn_forward.1} parent=0 // pred_region
    _
  $region17: #{simple_cnn_forward.1} parent=0 // pred_fallthru
    _
  // Predicated region
  $region18: #{simple_cnn_forward.1} parent=0 // pred_check
    _
  $region19: #{simple_cnn_forward.1} parent=0 // pred_check_branch
    %25 = sbr.rel (0) target = $region21
  $region20: #{simple_cnn_forward.1} parent=0 // pred_region
    _
  $region21: #{simple_cnn_forward.1} parent=0 // pred_fallthru
    _
  // Predicated region
  $region22: #{simple_cnn_forward.1} parent=0 // pred_check
    _
  $region23: #{simple_cnn_forward.1} parent=0 // pred_check_branch
    %27 = sbr.rel (0) target = $region25
  $region24: #{simple_cnn_forward.1} parent=0 // pred_region
    _
  $region25: #{simple_cnn_forward.1} parent=0 // pred_fallthru
    _
  // Predicated region
  $region26: #{simple_cnn_forward.1} parent=0 // pred_check
    _
  $region27: #{simple_cnn_forward.1} parent=0 // pred_check_branch
    %29 = sbr.rel (0) target = $region29
  $region28: #{simple_cnn_forward.1} parent=0 // pred_region
    _
  $region29: #{simple_cnn_forward.1} parent=0 // pred_fallthru
    _
  // Predicated region
  $region30: #{simple_cnn_forward.1} parent=0 // pred_check
    _
  $region31: #{simple_cnn_forward.1} parent=0 // pred_check_branch
    %31 = sbr.rel (0) target = $region33
  $region32: #{simple_cnn_forward.1} parent=0 // pred_region
    _
  $region33: #{simple_cnn_forward.1} parent=0 // pred_fallthru
    _
  // Predicated region
  $region34: #{simple_cnn_forward.1} parent=0 // pred_check
    _
  $region35: #{simple_cnn_forward.1} parent=0 // pred_check_branch
    %33 = sbr.rel (0) target = $region37
  $region36: #{simple_cnn_forward.1} parent=0 // pred_region
    _
  $region37: #{simple_cnn_forward.1} parent=0 // pred_fallthru
    _
  %v34 = vld [vmem:[%s0] sm:$0xff]
  %v35 = vld [vmem:[%s0 + $0x8] sm:$0xff]
  %v36 = vld [vmem:[%s0 + $0x10] sm:$0xff]
  %v37 = vld [vmem:[%s0 + $0x18] sm:$0xff]
  %v38 = vld [vmem:[%s0 + $0x20] sm:$0xff]
  %v39 = vld [vmem:[%s0 + $0x28] sm:$0xff]
  %v40 = vld [vmem:[%s0 + $0x30] sm:$0xff]
  %v41 = vld [vmem:[%s0 + $0x38] sm:$0xff]
  %v42 = vld [vmem:[%s0 + $0x40] sm:$0xff]
  %v43 = vld [vmem:[%s0 + $0x48] sm:$0xff]
  %v44 = vld [vmem:[%s0 + $0x50] sm:$0xff]
  %v45 = vld [vmem:[%s0 + $0x58] sm:$0xff]
  %v46 = vld [vmem:[%s0 + $0x60] sm:$0xff]
  %v47 = vld [vmem:[%s0 + $0x68] sm:$0xff]
  %v48 = vld [vmem:[%s0 + $0x70] sm:$0xff]
  %v49 = vld [vmem:[%s0 + $0x78] sm:$0xff]
  %v50 = vld [vmem:[%s0 + $0x80] sm:$0xff]
  %v51 = vld [vmem:[%s0 + $0x88] sm:$0xff]
  %v52 = vld [vmem:[%s0 + $0x90] sm:$0xff]
  %v53 = vld [vmem:[%s0 + $0x98] sm:$0xff]
  %v54 = vld [vmem:[%s0 + $0xa0] sm:$0xff]
  %v55 = vld [vmem:[%s0 + $0xa8] sm:$0xff]
  %v56 = vld [vmem:[%s0 + $0xb0] sm:$0xff]
  %v57 = vld [vmem:[%s0 + $0xb8] sm:$0xff]
  %v58 = vld [vmem:[%s0 + $0xc0] sm:$0xff]
  %v59 = vld [vmem:[%s0 + $0xc8] sm:$0xff]
  %v60 = vld [vmem:[%s0 + $0xd0] sm:$0xff]
  %v61 = vld [vmem:[%s0 + $0xd8] sm:$0xff]
  %v62 = vld [vmem:[%s0 + $0xe0] sm:$0xff]
  %v63 = vld [vmem:[%s0 + $0xe8] sm:$0xff]
  %v64 = vld [vmem:[%s0 + $0xf0] sm:$0xff]
  %v65 = vld [vmem:[%s0 + $0xf8] sm:$0xff]
  %v66 = vld [vmem:[%s0 + $0x100] sm:$0xff]
  %v67 = vld [vmem:[%s0 + $0x108] sm:$0xff]
  %v68 = vld [vmem:[%s0 + $0x110] sm:$0xff]
  %v69 = vld [vmem:[%s0 + $0x118] sm:$0xff]
  %v70 = vld [vmem:[%s0 + $0x120] sm:$0xff]
  %v71 = vld [vmem:[%s0 + $0x128] sm:$0xff]
  %v72 = vld [vmem:[%s0 + $0x130] sm:$0xff]
  %v73 = vld [vmem:[%s0 + $0x138] sm:$0xff]
  %v74 = vld [vmem:[%s0 + $0x140] sm:$0xff]
  %v75 = vld [vmem:[%s0 + $0x148] sm:$0xff]
  %v76 = vld [vmem:[%s0 + $0x150] sm:$0xff]
  %v77 = vld [vmem:[%s0 + $0x158] sm:$0xff]
  %v78 = vld [vmem:[%s0 + $0x160] sm:$0xff]
  %v79 = vld [vmem:[%s0 + $0x168] sm:$0xff]
  %v80 = vld [vmem:[%s0 + $0x170] sm:$0xff]
  %v81 = vld [vmem:[%s0 + $0x178] sm:$0xff]
  %v82 = vld [vmem:[%s0 + $0x180] sm:$0xff]
  %v83 = vld [vmem:[%s0 + $0x188] sm:$0xff]
  %v84 = vld [vmem:[%s0 + $0x190] sm:$0xff]
  %v85 = vld [vmem:[%s0 + $0x198] sm:$0xff]
  %v86 = vld [vmem:[%s0 + $0x1a0] sm:$0xff]
  %v87 = vld [vmem:[%s0 + $0x1a8] sm:$0xff]
  %v88 = vld [vmem:[%s0 + $0x1b0] sm:$0xff]
  %v89 = vld [vmem:[%s0 + $0x1b8] sm:$0xff]
  %v90 = vld [vmem:[%s0 + $0x1c0] sm:$0xff]
  %v91 = vld [vmem:[%s0 + $0x1c8] sm:$0xff]
  %v92 = vld [vmem:[%s0 + $0x1d0] sm:$0xff]
  %v93 = vld [vmem:[%s0 + $0x1d8] sm:$0xff]
  %v94 = vld [vmem:[%s0 + $0x1e0] sm:$0xff]
  %v95 = vld [vmem:[%s0 + $0x1e8] sm:$0xff]
  %v96 = vld [vmem:[%s0 + $0x1f0] sm:$0xff]
  %v97 = vld [vmem:[%s0 + $0x1f8] sm:$0xff]
  %v98 = vld [vmem:[%s1] sm:$0xff]
  %v99 = vld [vmem:[%s1 + $0x8] sm:$0xff]
  %v100 = vld [vmem:[%s1 + $0x10] sm:$0xff]
  %v101 = vld [vmem:[%s1 + $0x18] sm:$0x7]
  %vm102 = vcmask 220160
  %v104 = vsel %vm102, %v34, 0
  %v107 = vsel %vm102, %v35, 0
  %v110 = vsel %vm102, %v36, 0
  %v113 = vsel %vm102, %v37, 0
  %v116 = vsel %vm102, %v38, 0
  %v119 = vsel %vm102, %v39, 0
  %v122 = vsel %vm102, %v40, 0
  %v125 = vsel %vm102, %v41, 0
  %v128 = vsel %vm102, %v42, 0
  %v131 = vsel %vm102, %v43, 0
  %v134 = vsel %vm102, %v44, 0
  %v137 = vsel %vm102, %v45, 0
  %v140 = vsel %vm102, %v46, 0
  %v143 = vsel %vm102, %v47, 0
  %v146 = vsel %vm102, %v48, 0
  %v149 = vsel %vm102, %v49, 0
  %v152 = vsel %vm102, %v50, 0
  %v155 = vsel %vm102, %v51, 0
  %v158 = vsel %vm102, %v52, 0
  %v161 = vsel %vm102, %v53, 0
  %v164 = vsel %vm102, %v54, 0
  %v167 = vsel %vm102, %v55, 0
  %v170 = vsel %vm102, %v56, 0
  %v173 = vsel %vm102, %v57, 0
  %v176 = vsel %vm102, %v58, 0
  %v179 = vsel %vm102, %v59, 0
  %v182 = vsel %vm102, %v60, 0
  %v185 = vsel %vm102, %v61, 0
  %v188 = vsel %vm102, %v62, 0
  %v191 = vsel %vm102, %v63, 0
  %v194 = vsel %vm102, %v64, 0
  %v197 = vsel %vm102, %v65, 0
  %v200 = vsel %vm102, %v66, 0
  %v203 = vsel %vm102, %v67, 0
  %v206 = vsel %vm102, %v68, 0
  %v209 = vsel %vm102, %v69, 0
  %v212 = vsel %vm102, %v70, 0
  %v215 = vsel %vm102, %v71, 0
  %v218 = vsel %vm102, %v72, 0
  %v221 = vsel %vm102, %v73, 0
  %v224 = vsel %vm102, %v74, 0
  %v227 = vsel %vm102, %v75, 0
  %v230 = vsel %vm102, %v76, 0
  %v233 = vsel %vm102, %v77, 0
  %v236 = vsel %vm102, %v78, 0
  %v239 = vsel %vm102, %v79, 0
  %v242 = vsel %vm102, %v80, 0
  %v245 = vsel %vm102, %v81, 0
  %v248 = vsel %vm102, %v82, 0
  %v251 = vsel %vm102, %v83, 0
  %v254 = vsel %vm102, %v84, 0
  %v257 = vsel %vm102, %v85, 0
  %v260 = vsel %vm102, %v86, 0
  %v263 = vsel %vm102, %v87, 0
  %v266 = vsel %vm102, %v88, 0
  %v269 = vsel %vm102, %v89, 0
  %v272 = vsel %vm102, %v90, 0
  %v275 = vsel %vm102, %v91, 0
  %v278 = vsel %vm102, %v92, 0
  %v281 = vsel %vm102, %v93, 0
  %v284 = vsel %vm102, %v94, 0
  %v287 = vsel %vm102, %v95, 0
  %v290 = vsel %vm102, %v96, 0
  %v293 = vsel %vm102, %v97, 0
  %vm295 = vcmask 1042432
  %v297 = vsel %vm295, %v101, 0
  %299 = vmatprep.subr.mxu0 0.0
  %300 = vmatpush1.msra.mxu0 %v98
  %301 = vmatprep.subr.mxu0 0.0
  %302 = vmatpush1.msra.mxu0 %v99
  %303 = vmatprep.subr.mxu0 0.0
  %304 = vmatpush1.msra.mxu0 %v100
  %305 = vmatprep.subr.mxu0 0.0
  %306 = vmatpush1.msra.mxu0 %v297
  %307 = vmatprep.subr.mxu0 0.0
  %308 = vmatpush1.msra.mxu0 0.0
  %309 = vmatprep.subr.mxu0 0.0
  %310 = vmatpush1.msra.mxu0 0.0
  %311 = vmatprep.subr.mxu0 0.0
  %312 = vmatpush1.msra.mxu0 0.0
  %313 = vmatprep.subr.mxu0 0.0
  %314 = vmatpush1.msra.mxu0 0.0
  %315 = vmatprep.subr.mxu0 0.0
  %316 = vmatpush1.msra.mxu0 0.0
  %317 = vmatprep.subr.mxu0 0.0
  %318 = vmatpush1.msra.mxu0 0.0
  %319 = vmatprep.subr.mxu0 0.0
  %320 = vmatpush1.msra.mxu0 0.0
  %321 = vmatprep.subr.mxu0 0.0
  %322 = vmatpush1.msra.mxu0 0.0
  %323 = vmatprep.subr.mxu0 0.0
  %324 = vmatpush1.msra.mxu0 0.0
  %325 = vmatprep.subr.mxu0 0.0
  %326 = vmatpush1.msra.mxu0 0.0
  %327 = vmatprep.subr.mxu0 0.0
  %328 = vmatpush1.msra.mxu0 0.0
  %329 = vmatprep.subr.mxu0 0.0
  %330 = vmatpush1.msra.mxu0 0.0
  %331 = vmatprep.subr.mxu0 0.0
  %332 = vmatpush1.msra.mxu0 0.0
  %333 = vmatprep.subr.mxu0 0.0
  %334 = vmatpush1.msra.mxu0 0.0
  %335 = vmatprep.subr.mxu0 0.0
  %336 = vmatpush1.msra.mxu0 0.0
  %337 = vmatprep.subr.mxu0 0.0
  %338 = vmatpush1.msra.mxu0 0.0
  %339 = vmatprep.subr.mxu0 0.0
  %340 = vmatpush1.msra.mxu0 0.0
  %341 = vmatprep.subr.mxu0 0.0
  %342 = vmatpush1.msra.mxu0 0.0
  %343 = vmatprep.subr.mxu0 0.0
  %344 = vmatpush1.msra.mxu0 0.0
  %345 = vmatprep.subr.mxu0 0.0
  %346 = vmatpush1.msra.mxu0 0.0
  %347 = vmatprep.subr.mxu0 0.0
  %348 = vmatpush1.msra.mxu0 0.0
  %349 = vmatprep.subr.mxu0 0.0
  %350 = vmatpush1.msra.mxu0 0.0
  %351 = vmatprep.subr.mxu0 0.0
  %352 = vmatpush1.msra.mxu0 0.0
  %353 = vmatprep.subr.mxu0 0.0
  %354 = vmatpush1.msra.mxu0 0.0
  %355 = vmatprep.subr.mxu0 0.0
  %356 = vmatpush1.msra.mxu0 0.0
  %357 = vmatprep.subr.mxu0 0.0
  %358 = vmatpush1.msra.mxu0 0.0
  %359 = vmatprep.subr.mxu0 0.0
  %360 = vmatpush1.msra.mxu0 0.0
  %361 = vmatprep.subr.mxu0 0.0
  %362 = vmatpush1.msra.mxu0 0.0
  %363 = vmatprep.mubr.f32.mxu0 0.0
  %364 = vmatmul.mubr.f32.gmra.mrb[0].mxu0 %v104
  %v365 = vpop.f32.mrb[0].mxu0
  %v366 = vadd.f32 0.0, %v365
  %v367 = vpop.f32.mrb[0].mxu0
  %368 = vmatprep.mubr.f32.mxu0 0.0
  %369 = vmatmul.mubr.f32.gmra.mrb[0].mxu0 %v107
  %v370 = vpop.f32.mrb[0].mxu0
  %v371 = vadd.f32 0.0, %v370
  %v372 = vpop.f32.mrb[0].mxu0
  %373 = vmatprep.mubr.f32.mxu0 0.0
  %374 = vmatmul.mubr.f32.gmra.mrb[0].mxu0 %v110
  %v375 = vpop.f32.mrb[0].mxu0
  %v376 = vadd.f32 0.0, %v375
  %v377 = vpop.f32.mrb[0].mxu0
  %378 = vmatprep.mubr.f32.mxu0 0.0
  %379 = vmatmul.mubr.f32.gmra.mrb[0].mxu0 %v113
  %v380 = vpop.f32.mrb[0].mxu0
  %v381 = vadd.f32 0.0, %v380
  %v382 = vpop.f32.mrb[0].mxu0
  %383 = vmatprep.mubr.f32.mxu0 0.0
  %384 = vmatmul.mubr.f32.gmra.mrb[0].mxu0 %v116
  %v385 = vpop.f32.mrb[0].mxu0
  %v386 = vadd.f32 0.0, %v385
  %v387 = vpop.f32.mrb[0].mxu0
  %388 = vmatprep.mubr.f32.mxu0 0.0
  %389 = vmatmul.mubr.f32.gmra.mrb[0].mxu0 %v119
  %v390 = vpop.f32.mrb[0].mxu0
  %v391 = vadd.f32 0.0, %v390
  %v392 = vpop.f32.mrb[0].mxu0
  %393 = vmatprep.mubr.f32.mxu0 0.0
  %394 = vmatmul.mubr.f32.gmra.mrb[0].mxu0 %v122
  %v395 = vpop.f32.mrb[0].mxu0
  %v396 = vadd.f32 0.0, %v395
  %v397 = vpop.f32.mrb[0].mxu0
  %398 = vmatprep.mubr.f32.mxu0 0.0
  %399 = vmatmul.mubr.f32.gmra.mrb[0].mxu0 %v125
  %v400 = vpop.f32.mrb[0].mxu0
  %v401 = vadd.f32 0.0, %v400
  %v402 = vpop.f32.mrb[0].mxu0
  %403 = vmatprep.mubr.f32.mxu0 0.0
  %404 = vmatmul.mubr.f32.gmra.mrb[0].mxu0 %v128
  %v405 = vpop.f32.mrb[0].mxu0
  %v406 = vadd.f32 0.0, %v405
  %v407 = vpop.f32.mrb[0].mxu0
  %408 = vmatprep.mubr.f32.mxu0 0.0
  %409 = vmatmul.mubr.f32.gmra.mrb[0].mxu0 %v131
  %v410 = vpop.f32.mrb[0].mxu0
  %v411 = vadd.f32 0.0, %v410
  %v412 = vpop.f32.mrb[0].mxu0
  %413 = vmatprep.mubr.f32.mxu0 0.0
  %414 = vmatmul.mubr.f32.gmra.mrb[0].mxu0 %v134
  %v415 = vpop.f32.mrb[0].mxu0
  %v416 = vadd.f32 0.0, %v415
  %v417 = vpop.f32.mrb[0].mxu0
  %418 = vmatprep.mubr.f32.mxu0 0.0
  %419 = vmatmul.mubr.f32.gmra.mrb[0].mxu0 %v137
  %v420 = vpop.f32.mrb[0].mxu0
  %v421 = vadd.f32 0.0, %v420
  %v422 = vpop.f32.mrb[0].mxu0
  %423 = vmatprep.mubr.f32.mxu0 0.0
  %424 = vmatmul.mubr.f32.gmra.mrb[0].mxu0 %v140
  %v425 = vpop.f32.mrb[0].mxu0
  %v426 = vadd.f32 0.0, %v425
  %v427 = vpop.f32.mrb[0].mxu0
  %428 = vmatprep.mubr.f32.mxu0 0.0
  %429 = vmatmul.mubr.f32.gmra.mrb[0].mxu0 %v143
  %v430 = vpop.f32.mrb[0].mxu0
  %v431 = vadd.f32 0.0, %v430
  %v432 = vpop.f32.mrb[0].mxu0
  %433 = vmatprep.mubr.f32.mxu0 0.0
  %434 = vmatmul.mubr.f32.gmra.mrb[0].mxu0 %v146
  %v435 = vpop.f32.mrb[0].mxu0
  %v436 = vadd.f32 0.0, %v435
  %v437 = vpop.f32.mrb[0].mxu0
  %438 = vmatprep.mubr.f32.mxu0 0.0
  %439 = vmatmul.mubr.f32.gmra.mrb[0].mxu0 %v149
  %v440 = vpop.f32.mrb[0].mxu0
  %v441 = vadd.f32 0.0, %v440
  %v442 = vpop.f32.mrb[0].mxu0
  %443 = vmatprep.mubr.f32.mxu0 0.0
  %444 = vmatmul.mubr.f32.gmra.mrb[0].mxu0 %v152
  %v445 = vpop.f32.mrb[0].mxu0
  %v446 = vadd.f32 0.0, %v445
  %v447 = vpop.f32.mrb[0].mxu0
  %448 = vmatprep.mubr.f32.mxu0 0.0
  %449 = vmatmul.mubr.f32.gmra.mrb[0].mxu0 %v155
  %v450 = vpop.f32.mrb[0].mxu0
  %v451 = vadd.f32 0.0, %v450
  %v452 = vpop.f32.mrb[0].mxu0
  %453 = vmatprep.mubr.f32.mxu0 0.0
  %454 = vmatmul.mubr.f32.gmra.mrb[0].mxu0 %v158
  %v455 = vpop.f32.mrb[0].mxu0
  %v456 = vadd.f32 0.0, %v455
  %v457 = vpop.f32.mrb[0].mxu0
  %458 = vmatprep.mubr.f32.mxu0 0.0
  %459 = vmatmul.mubr.f32.gmra.mrb[0].mxu0 %v161
  %v460 = vpop.f32.mrb[0].mxu0
  %v461 = vadd.f32 0.0, %v460
  %v462 = vpop.f32.mrb[0].mxu0
  %463 = vmatprep.mubr.f32.mxu0 0.0
  %464 = vmatmul.mubr.f32.gmra.mrb[0].mxu0 %v164
  %v465 = vpop.f32.mrb[0].mxu0
  %v466 = vadd.f32 0.0, %v465
  %v467 = vpop.f32.mrb[0].mxu0
  %468 = vmatprep.mubr.f32.mxu0 0.0
  %469 = vmatmul.mubr.f32.gmra.mrb[0].mxu0 %v167
  %v470 = vpop.f32.mrb[0].mxu0
  %v471 = vadd.f32 0.0, %v470
  %v472 = vpop.f32.mrb[0].mxu0
  %473 = vmatprep.mubr.f32.mxu0 0.0
  %474 = vmatmul.mubr.f32.gmra.mrb[0].mxu0 %v170
  %v475 = vpop.f32.mrb[0].mxu0
  %v476 = vadd.f32 0.0, %v475
  %v477 = vpop.f32.mrb[0].mxu0
  %478 = vmatprep.mubr.f32.mxu0 0.0
  %479 = vmatmul.mubr.f32.gmra.mrb[0].mxu0 %v173
  %v480 = vpop.f32.mrb[0].mxu0
  %v481 = vadd.f32 0.0, %v480
  %v482 = vpop.f32.mrb[0].mxu0
  %483 = vmatprep.mubr.f32.mxu0 0.0
  %484 = vmatmul.mubr.f32.gmra.mrb[0].mxu0 %v176
  %v485 = vpop.f32.mrb[0].mxu0
  %v486 = vadd.f32 0.0, %v485
  %v487 = vpop.f32.mrb[0].mxu0
  %488 = vmatprep.mubr.f32.mxu0 0.0
  %489 = vmatmul.mubr.f32.gmra.mrb[0].mxu0 %v179
  %v490 = vpop.f32.mrb[0].mxu0
  %v491 = vadd.f32 0.0, %v490
  %v492 = vpop.f32.mrb[0].mxu0
  %493 = vmatprep.mubr.f32.mxu0 0.0
  %494 = vmatmul.mubr.f32.gmra.mrb[0].mxu0 %v182
  %v495 = vpop.f32.mrb[0].mxu0
  %v496 = vadd.f32 0.0, %v495
  %v497 = vpop.f32.mrb[0].mxu0
  %498 = vmatprep.mubr.f32.mxu0 0.0
  %499 = vmatmul.mubr.f32.gmra.mrb[0].mxu0 %v185
  %v500 = vpop.f32.mrb[0].mxu0
  %v501 = vadd.f32 0.0, %v500
  %v502 = vpop.f32.mrb[0].mxu0
  %503 = vmatprep.mubr.f32.mxu0 0.0
  %504 = vmatmul.mubr.f32.gmra.mrb[0].mxu0 %v188
  %v505 = vpop.f32.mrb[0].mxu0
  %v506 = vadd.f32 0.0, %v505
  %v507 = vpop.f32.mrb[0].mxu0
  %508 = vmatprep.mubr.f32.mxu0 0.0
  %509 = vmatmul.mubr.f32.gmra.mrb[0].mxu0 %v191
  %v510 = vpop.f32.mrb[0].mxu0
  %v511 = vadd.f32 0.0, %v510
  %v512 = vpop.f32.mrb[0].mxu0
  %513 = vmatprep.mubr.f32.mxu0 0.0
  %514 = vmatmul.mubr.f32.gmra.mrb[0].mxu0 %v194
  %v515 = vpop.f32.mrb[0].mxu0
  %v516 = vadd.f32 0.0, %v515
  %v517 = vpop.f32.mrb[0].mxu0
  %518 = vmatprep.mubr.f32.mxu0 0.0
  %519 = vmatmul.mubr.f32.gmra.mrb[0].mxu0 %v197
  %v520 = vpop.f32.mrb[0].mxu0
  %v521 = vadd.f32 0.0, %v520
  %v522 = vpop.f32.mrb[0].mxu0
  %523 = vmatprep.mubr.f32.mxu0 0.0
  %524 = vmatmul.mubr.f32.gmra.mrb[0].mxu0 %v200
  %v525 = vpop.f32.mrb[0].mxu0
  %v526 = vadd.f32 0.0, %v525
  %v527 = vpop.f32.mrb[0].mxu0
  %528 = vmatprep.mubr.f32.mxu0 0.0
  %529 = vmatmul.mubr.f32.gmra.mrb[0].mxu0 %v203
  %v530 = vpop.f32.mrb[0].mxu0
  %v531 = vadd.f32 0.0, %v530
  %v532 = vpop.f32.mrb[0].mxu0
  %533 = vmatprep.mubr.f32.mxu0 0.0
  %534 = vmatmul.mubr.f32.gmra.mrb[0].mxu0 %v206
  %v535 = vpop.f32.mrb[0].mxu0
  %v536 = vadd.f32 0.0, %v535
  %v537 = vpop.f32.mrb[0].mxu0
  %538 = vmatprep.mubr.f32.mxu0 0.0
  %539 = vmatmul.mubr.f32.gmra.mrb[0].mxu0 %v209
  %v540 = vpop.f32.mrb[0].mxu0
  %v541 = vadd.f32 0.0, %v540
  %v542 = vpop.f32.mrb[0].mxu0
  %543 = vmatprep.mubr.f32.mxu0 0.0
  %544 = vmatmul.mubr.f32.gmra.mrb[0].mxu0 %v212
  %v545 = vpop.f32.mrb[0].mxu0
  %v546 = vadd.f32 0.0, %v545
  %v547 = vpop.f32.mrb[0].mxu0
  %548 = vmatprep.mubr.f32.mxu0 0.0
  %549 = vmatmul.mubr.f32.gmra.mrb[0].mxu0 %v215
  %v550 = vpop.f32.mrb[0].mxu0
  %v551 = vadd.f32 0.0, %v550
  %v552 = vpop.f32.mrb[0].mxu0
  %553 = vmatprep.mubr.f32.mxu0 0.0
  %554 = vmatmul.mubr.f32.gmra.mrb[0].mxu0 %v218
  %v555 = vpop.f32.mrb[0].mxu0
  %v556 = vadd.f32 0.0, %v555
  %v557 = vpop.f32.mrb[0].mxu0
  %558 = vmatprep.mubr.f32.mxu0 0.0
  %559 = vmatmul.mubr.f32.gmra.mrb[0].mxu0 %v221
  %v560 = vpop.f32.mrb[0].mxu0
  %v561 = vadd.f32 0.0, %v560
  %v562 = vpop.f32.mrb[0].mxu0
  %563 = vmatprep.mubr.f32.mxu0 0.0
  %564 = vmatmul.mubr.f32.gmra.mrb[0].mxu0 %v224
  %v565 = vpop.f32.mrb[0].mxu0
  %v566 = vadd.f32 0.0, %v565
  %v567 = vpop.f32.mrb[0].mxu0
  %568 = vmatprep.mubr.f32.mxu0 0.0
  %569 = vmatmul.mubr.f32.gmra.mrb[0].mxu0 %v227
  %v570 = vpop.f32.mrb[0].mxu0
  %v571 = vadd.f32 0.0, %v570
  %v572 = vpop.f32.mrb[0].mxu0
  %573 = vmatprep.mubr.f32.mxu0 0.0
  %574 = vmatmul.mubr.f32.gmra.mrb[0].mxu0 %v230
  %v575 = vpop.f32.mrb[0].mxu0
  %v576 = vadd.f32 0.0, %v575
  %v577 = vpop.f32.mrb[0].mxu0
  %578 = vmatprep.mubr.f32.mxu0 0.0
  %579 = vmatmul.mubr.f32.gmra.mrb[0].mxu0 %v233
  %v580 = vpop.f32.mrb[0].mxu0
  %v581 = vadd.f32 0.0, %v580
  %v582 = vpop.f32.mrb[0].mxu0
  %583 = vmatprep.mubr.f32.mxu0 0.0
  %584 = vmatmul.mubr.f32.gmra.mrb[0].mxu0 %v236
  %v585 = vpop.f32.mrb[0].mxu0
  %v586 = vadd.f32 0.0, %v585
  %v587 = vpop.f32.mrb[0].mxu0
  %588 = vmatprep.mubr.f32.mxu0 0.0
  %589 = vmatmul.mubr.f32.gmra.mrb[0].mxu0 %v239
  %v590 = vpop.f32.mrb[0].mxu0
  %v591 = vadd.f32 0.0, %v590
  %v592 = vpop.f32.mrb[0].mxu0
  %593 = vmatprep.mubr.f32.mxu0 0.0
  %594 = vmatmul.mubr.f32.gmra.mrb[0].mxu0 %v242
  %v595 = vpop.f32.mrb[0].mxu0
  %v596 = vadd.f32 0.0, %v595
  %v597 = vpop.f32.mrb[0].mxu0
  %598 = vmatprep.mubr.f32.mxu0 0.0
  %599 = vmatmul.mubr.f32.gmra.mrb[0].mxu0 %v245
  %v600 = vpop.f32.mrb[0].mxu0
  %v601 = vadd.f32 0.0, %v600
  %v602 = vpop.f32.mrb[0].mxu0
  %603 = vmatprep.mubr.f32.mxu0 0.0
  %604 = vmatmul.mubr.f32.gmra.mrb[0].mxu0 %v248
  %v605 = vpop.f32.mrb[0].mxu0
  %v606 = vadd.f32 0.0, %v605
  %v607 = vpop.f32.mrb[0].mxu0
  %608 = vmatprep.mubr.f32.mxu0 0.0
  %609 = vmatmul.mubr.f32.gmra.mrb[0].mxu0 %v251
  %v610 = vpop.f32.mrb[0].mxu0
  %v611 = vadd.f32 0.0, %v610
  %v612 = vpop.f32.mrb[0].mxu0
  %613 = vmatprep.mubr.f32.mxu0 0.0
  %614 = vmatmul.mubr.f32.gmra.mrb[0].mxu0 %v254
  %v615 = vpop.f32.mrb[0].mxu0
  %v616 = vadd.f32 0.0, %v615
  %v617 = vpop.f32.mrb[0].mxu0
  %618 = vmatprep.mubr.f32.mxu0 0.0
  %619 = vmatmul.mubr.f32.gmra.mrb[0].mxu0 %v257
  %v620 = vpop.f32.mrb[0].mxu0
  %v621 = vadd.f32 0.0, %v620
  %v622 = vpop.f32.mrb[0].mxu0
  %623 = vmatprep.mubr.f32.mxu0 0.0
  %624 = vmatmul.mubr.f32.gmra.mrb[0].mxu0 %v260
  %v625 = vpop.f32.mrb[0].mxu0
  %v626 = vadd.f32 0.0, %v625
  %v627 = vpop.f32.mrb[0].mxu0
  %628 = vmatprep.mubr.f32.mxu0 0.0
  %629 = vmatmul.mubr.f32.gmra.mrb[0].mxu0 %v263
  %v630 = vpop.f32.mrb[0].mxu0
  %v631 = vadd.f32 0.0, %v630
  %v632 = vpop.f32.mrb[0].mxu0
  %633 = vmatprep.mubr.f32.mxu0 0.0
  %634 = vmatmul.mubr.f32.gmra.mrb[0].mxu0 %v266
  %v635 = vpop.f32.mrb[0].mxu0
  %v636 = vadd.f32 0.0, %v635
  %v637 = vpop.f32.mrb[0].mxu0
  %638 = vmatprep.mubr.f32.mxu0 0.0
  %639 = vmatmul.mubr.f32.gmra.mrb[0].mxu0 %v269
  %v640 = vpop.f32.mrb[0].mxu0
  %v641 = vadd.f32 0.0, %v640
  %v642 = vpop.f32.mrb[0].mxu0
  %643 = vmatprep.mubr.f32.mxu0 0.0
  %644 = vmatmul.mubr.f32.gmra.mrb[0].mxu0 %v272
  %v645 = vpop.f32.mrb[0].mxu0
  %v646 = vadd.f32 0.0, %v645
  %v647 = vpop.f32.mrb[0].mxu0
  %648 = vmatprep.mubr.f32.mxu0 0.0
  %649 = vmatmul.mubr.f32.gmra.mrb[0].mxu0 %v275
  %v650 = vpop.f32.mrb[0].mxu0
  %v651 = vadd.f32 0.0, %v650
  %v652 = vpop.f32.mrb[0].mxu0
  %653 = vmatprep.mubr.f32.mxu0 0.0
  %654 = vmatmul.mubr.f32.gmra.mrb[0].mxu0 %v278
  %v655 = vpop.f32.mrb[0].mxu0
  %v656 = vadd.f32 0.0, %v655
  %v657 = vpop.f32.mrb[0].mxu0
  %658 = vmatprep.mubr.f32.mxu0 0.0
  %659 = vmatmul.mubr.f32.gmra.mrb[0].mxu0 %v281
  %v660 = vpop.f32.mrb[0].mxu0
  %v661 = vadd.f32 0.0, %v660
  %v662 = vpop.f32.mrb[0].mxu0
  %663 = vmatprep.mubr.f32.mxu0 0.0
  %664 = vmatmul.mubr.f32.gmra.mrb[0].mxu0 %v284
  %v665 = vpop.f32.mrb[0].mxu0
  %v666 = vadd.f32 0.0, %v665
  %v667 = vpop.f32.mrb[0].mxu0
  %668 = vmatprep.mubr.f32.mxu0 0.0
  %669 = vmatmul.mubr.f32.gmra.mrb[0].mxu0 %v287
  %v670 = vpop.f32.mrb[0].mxu0
  %v671 = vadd.f32 0.0, %v670
  %v672 = vpop.f32.mrb[0].mxu0
  %673 = vmatprep.mubr.f32.mxu0 0.0
  %674 = vmatmul.mubr.f32.gmra.mrb[0].mxu0 %v290
  %v675 = vpop.f32.mrb[0].mxu0
  %v676 = vadd.f32 0.0, %v675
  %v677 = vpop.f32.mrb[0].mxu0
  %678 = vmatprep.mubr.f32.mxu0 0.0
  %679 = vmatmul.mubr.f32.gmra.mrb[0].mxu0 %v293
  %v680 = vpop.f32.mrb[0].mxu0
  %v681 = vadd.f32 0.0, %v680
  %v682 = vpop.f32.mrb[0].mxu0
  %683 = vdwg.mxu0
  %vm684 = vcmask 130048
  %v685 = vsel %vm684, %v366, -inf
  %v686 = vsel %vm684, %v446, -inf
  %v687 = vmax.f32 %v685, %v686
  %v688 = vsel %vm684, %v526, -inf
  %v689 = vmax.f32 %v687, %v688
  %v690 = vsel %vm684, %v606, -inf
  %v691 = vmax.f32 %v689, %v690
  %v692 = vsel %vm684, %v371, -inf
  %v693 = vsel %vm684, %v451, -inf
  %v694 = vmax.f32 %v692, %v693
  %v695 = vsel %vm684, %v531, -inf
  %v696 = vmax.f32 %v694, %v695
  %v697 = vsel %vm684, %v611, -inf
  %v698 = vmax.f32 %v696, %v697
  %v699 = vsel %vm684, %v376, -inf
  %v700 = vsel %vm684, %v456, -inf
  %v701 = vmax.f32 %v699, %v700
  %v702 = vsel %vm684, %v536, -inf
  %v703 = vmax.f32 %v701, %v702
  %v704 = vsel %vm684, %v616, -inf
  %v705 = vmax.f32 %v703, %v704
  %v706 = vsel %vm684, %v381, -inf
  %v707 = vsel %vm684, %v461, -inf
  %v708 = vmax.f32 %v706, %v707
  %v709 = vsel %vm684, %v541, -inf
  %v710 = vmax.f32 %v708, %v709
  %v711 = vsel %vm684, %v621, -inf
  %v712 = vmax.f32 %v710, %v711
  %v713 = vsel %vm684, %v386, -inf
  %v714 = vsel %vm684, %v466, -inf
  %v715 = vmax.f32 %v713, %v714
  %v716 = vsel %vm684, %v546, -inf
  %v717 = vmax.f32 %v715, %v716
  %v718 = vsel %vm684, %v626, -inf
  %v719 = vmax.f32 %v717, %v718
  %v720 = vsel %vm684, %v391, -inf
  %v721 = vsel %vm684, %v471, -inf
  %v722 = vmax.f32 %v720, %v721
  %v723 = vsel %vm684, %v551, -inf
  %v724 = vmax.f32 %v722, %v723
  %v725 = vsel %vm684, %v631, -inf
  %v726 = vmax.f32 %v724, %v725
  %v727 = vsel %vm684, %v396, -inf
  %v728 = vsel %vm684, %v476, -inf
  %v729 = vmax.f32 %v727, %v728
  %v730 = vsel %vm684, %v556, -inf
  %v731 = vmax.f32 %v729, %v730
  %v732 = vsel %vm684, %v636, -inf
  %v733 = vmax.f32 %v731, %v732
  %v734 = vsel %vm684, %v401, -inf
  %v735 = vsel %vm684, %v481, -inf
  %v736 = vmax.f32 %v734, %v735
  %v737 = vsel %vm684, %v561, -inf
  %v738 = vmax.f32 %v736, %v737
  %v739 = vsel %vm684, %v641, -inf
  %v740 = vmax.f32 %v738, %v739
  %v741 = vsel %vm684, %v406, -inf
  %v742 = vsel %vm684, %v486, -inf
  %v743 = vmax.f32 %v741, %v742
  %v744 = vsel %vm684, %v566, -inf
  %v745 = vmax.f32 %v743, %v744
  %v746 = vsel %vm684, %v646, -inf
  %v747 = vmax.f32 %v745, %v746
  %v748 = vsel %vm684, %v411, -inf
  %v749 = vsel %vm684, %v491, -inf
  %v750 = vmax.f32 %v748, %v749
  %v751 = vsel %vm684, %v571, -inf
  %v752 = vmax.f32 %v750, %v751
  %v753 = vsel %vm684, %v651, -inf
  %v754 = vmax.f32 %v752, %v753
  %v755 = vsel %vm684, %v416, -inf
  %v756 = vsel %vm684, %v496, -inf
  %v757 = vmax.f32 %v755, %v756
  %v758 = vsel %vm684, %v576, -inf
  %v759 = vmax.f32 %v757, %v758
  %v760 = vsel %vm684, %v656, -inf
  %v761 = vmax.f32 %v759, %v760
  %v762 = vsel %vm684, %v421, -inf
  %v763 = vsel %vm684, %v501, -inf
  %v764 = vmax.f32 %v762, %v763
  %v765 = vsel %vm684, %v581, -inf
  %v766 = vmax.f32 %v764, %v765
  %v767 = vsel %vm684, %v661, -inf
  %v768 = vmax.f32 %v766, %v767
  %v769 = vsel %vm684, %v426, -inf
  %v770 = vsel %vm684, %v506, -inf
  %v771 = vmax.f32 %v769, %v770
  %v772 = vsel %vm684, %v586, -inf
  %v773 = vmax.f32 %v771, %v772
  %v774 = vsel %vm684, %v666, -inf
  %v775 = vmax.f32 %v773, %v774
  %v776 = vsel %vm684, %v431, -inf
  %v777 = vsel %vm684, %v511, -inf
  %v778 = vmax.f32 %v776, %v777
  %v779 = vsel %vm684, %v591, -inf
  %v780 = vmax.f32 %v778, %v779
  %v781 = vsel %vm684, %v671, -inf
  %v782 = vmax.f32 %v780, %v781
  %v783 = vsel %vm684, %v436, -inf
  %v784 = vsel %vm684, %v516, -inf
  %v785 = vmax.f32 %v783, %v784
  %v786 = vsel %vm684, %v596, -inf
  %v787 = vmax.f32 %v785, %v786
  %v788 = vsel %vm684, %v676, -inf
  %v789 = vmax.f32 %v787, %v788
  %v790 = vsel %vm684, %v441, -inf
  %v791 = vsel %vm684, %v521, -inf
  %v792 = vmax.f32 %v790, %v791
  %v793 = vsel %vm684, %v601, -inf
  %v794 = vmax.f32 %v792, %v793
  %v795 = vsel %vm684, %v681, -inf
  %v796 = vmax.f32 %v794, %v795
  %v797 = vld [vmem:[%s2] sm:$0x1]
  %v799 = vlaneseq
  %v800 = vshrl.u32 %v799, 7
  %v801 = vsub.s32 0, %v800
  %v802 = vrot.slane %v797, %v801
  %v804 = vadd.f32 %v691, %v802
  %v805 = vadd.f32 %v698, %v802
  %v806 = vadd.f32 %v705, %v802
  %v807 = vadd.f32 %v712, %v802
  %v808 = vadd.f32 %v719, %v802
  %v809 = vadd.f32 %v726, %v802
  %v810 = vadd.f32 %v733, %v802
  %v811 = vadd.f32 %v740, %v802
  %v812 = vadd.f32 %v747, %v802
  %v813 = vadd.f32 %v754, %v802
  %v814 = vadd.f32 %v761, %v802
  %v815 = vadd.f32 %v768, %v802
  %v816 = vadd.f32 %v775, %v802
  %v817 = vadd.f32 %v782, %v802
  %v818 = vadd.f32 %v789, %v802
  %v819 = vadd.f32 %v796, %v802
  %v820 = vmax.f32 %v804, 0.0
  %v821 = vmax.f32 %v805, 0.0
  %v822 = vmax.f32 %v806, 0.0
  %v823 = vmax.f32 %v807, 0.0
  %v824 = vmax.f32 %v808, 0.0
  %v825 = vmax.f32 %v809, 0.0
  %v826 = vmax.f32 %v810, 0.0
  %v827 = vmax.f32 %v811, 0.0
  %v828 = vmax.f32 %v812, 0.0
  %v829 = vmax.f32 %v813, 0.0
  %v830 = vmax.f32 %v814, 0.0
  %v831 = vmax.f32 %v815, 0.0
  %v832 = vmax.f32 %v816, 0.0
  %v833 = vmax.f32 %v817, 0.0
  %v834 = vmax.f32 %v818, 0.0
  %v835 = vmax.f32 %v819, 0.0
  %836 = vst.msk [vmem:[#allocation2] sm:$0xff] %vm684, 0.0
  %vm837 = vcmask 123904
  %838 = vst.msk [vmem:[#allocation2 + $0x8] sm:$0x3] %vm837, 0.0
  %839 = vst.msk [vmem:[#allocation2 + $0x10] sm:$0xff] %vm684, 0.0
  %840 = vst.msk [vmem:[#allocation2 + $0x18] sm:$0x3] %vm837, 0.0
  %841 = vst.msk [vmem:[#allocation2 + $0x20] sm:$0xff] %vm684, 0.0
  %842 = vst.msk [vmem:[#allocation2 + $0x28] sm:$0x3] %vm837, 0.0
  %843 = vst.msk [vmem:[#allocation2 + $0x30] sm:$0xff] %vm684, 0.0
  %844 = vst.msk [vmem:[#allocation2 + $0x38] sm:$0x3] %vm837, 0.0
  %845 = vst.msk [vmem:[#allocation2 + $0x40] sm:$0xff] %vm684, 0.0
  %846 = vst.msk [vmem:[#allocation2 + $0x48] sm:$0x3] %vm837, 0.0
  %847 = vst.msk [vmem:[#allocation2 + $0x50] sm:$0xff] %vm684, 0.0
  %848 = vst.msk [vmem:[#allocation2 + $0x58] sm:$0x3] %vm837, 0.0
  %849 = vst.msk [vmem:[#allocation2 + $0x60] sm:$0xff] %vm684, 0.0
  %850 = vst.msk [vmem:[#allocation2 + $0x68] sm:$0x3] %vm837, 0.0
  %851 = vst.msk [vmem:[#allocation2 + $0x70] sm:$0xff] %vm684, 0.0
  %852 = vst.msk [vmem:[#allocation2 + $0x78] sm:$0x3] %vm837, 0.0
  %853 = vst.msk [vmem:[#allocation2 + $0x80] sm:$0xff] %vm684, 0.0
  %854 = vst.msk [vmem:[#allocation2 + $0x88] sm:$0x3] %vm837, 0.0
  %855 = vst.msk [vmem:[#allocation2 + $0x90] sm:$0xff] %vm684, 0.0
  %856 = vst.msk [vmem:[#allocation2 + $0x98] sm:$0x3] %vm837, 0.0
  %857 = vst.msk [vmem:[#allocation2 + $0xa0] sm:$0xff] %vm684, 0.0
  %858 = vst.msk [vmem:[#allocation2 + $0xa8] sm:$0x3] %vm837, 0.0
  %859 = vst.msk [vmem:[#allocation2 + $0xb0] sm:$0xff] %vm684, 0.0
  %860 = vst.msk [vmem:[#allocation2 + $0xb8] sm:$0x3] %vm837, 0.0
  %861 = vst.msk [vmem:[#allocation2 + $0xc0] sm:$0xff] %vm684, 0.0
  %862 = vst.msk [vmem:[#allocation2 + $0xc8] sm:$0x3] %vm837, 0.0
  %863 = vst.msk [vmem:[#allocation2 + $0xd0] sm:$0xff] %vm684, 0.0
  %864 = vst.msk [vmem:[#allocation2 + $0xd8] sm:$0x3] %vm837, 0.0
  %865 = vst.msk [vmem:[#allocation2 + $0xe0] sm:$0xff] %vm684, 0.0
  %866 = vst.msk [vmem:[#allocation2 + $0xe8] sm:$0x3] %vm837, 0.0
  %867 = vst.msk [vmem:[#allocation2 + $0xf0] sm:$0xff] %vm684, 0.0
  %868 = vst.msk [vmem:[#allocation2 + $0xf8] sm:$0x3] %vm837, 0.0
  %869 = vst.msk [vmem:[#allocation2 + $0x100] sm:$0xff] %vm684, 0.0
  %870 = vst.msk [vmem:[#allocation2 + $0x108] sm:$0x3] %vm837, 0.0
  %871 = vst.msk [vmem:[#allocation2 + $0x110] sm:$0xff] %vm684, 0.0
  %872 = vst.msk [vmem:[#allocation2 + $0x118] sm:$0x3] %vm837, 0.0
  %873 = vst.msk [vmem:[#allocation2 + $0x120] sm:$0xff] %vm684, 0.0
  %874 = vst.msk [vmem:[#allocation2 + $0x128] sm:$0x3] %vm837, 0.0
  %875 = vst.msk [vmem:[#allocation2 + $0x130] sm:$0xff] %vm684, 0.0
  %876 = vst.msk [vmem:[#allocation2 + $0x138] sm:$0x3] %vm837, 0.0
  %s877 = scalar_lea.vmem [#allocation2], 16
  %878 = vst.msk [vmem:[%s877 + $0x1] sm:$0xff] %vm684, %v820
  %879 = vst.msk [vmem:[%s877 + $0x11] sm:$0xff] %vm684, %v821
  %880 = vst.msk [vmem:[%s877 + $0x21] sm:$0xff] %vm684, %v822
  %881 = vst.msk [vmem:[%s877 + $0x31] sm:$0xff] %vm684, %v823
  %882 = vst.msk [vmem:[%s877 + $0x41] sm:$0xff] %vm684, %v824
  %883 = vst.msk [vmem:[%s877 + $0x51] sm:$0xff] %vm684, %v825
  %884 = vst.msk [vmem:[%s877 + $0x61] sm:$0xff] %vm684, %v826
  %885 = vst.msk [vmem:[%s877 + $0x71] sm:$0xff] %vm684, %v827
  %886 = vst.msk [vmem:[%s877 + $0xa1] sm:$0xff] %vm684, %v828
  %887 = vst.msk [vmem:[%s877 + $0xb1] sm:$0xff] %vm684, %v829
  %888 = vst.msk [vmem:[%s877 + $0xc1] sm:$0xff] %vm684, %v830
  %889 = vst.msk [vmem:[%s877 + $0xd1] sm:$0xff] %vm684, %v831
  %890 = vst.msk [vmem:[%s877 + $0xe1] sm:$0xff] %vm684, %v832
  %891 = vst.msk [vmem:[%s877 + $0xf1] sm:$0xff] %vm684, %v833
  %892 = vst.msk [vmem:[%s877 + $0x101] sm:$0xff] %vm684, %v834
  %893 = vst.msk [vmem:[%s877 + $0x111] sm:$0xff] %vm684, %v835
  %v894 = vld [vmem:[#allocation2] sm:$0xff]
  %v895 = vld [vmem:[#allocation2 + $0x10] sm:$0xff]
  %v896 = vld [vmem:[#allocation2 + $0x20] sm:$0xff]
  %v897 = vld [vmem:[#allocation2 + $0x30] sm:$0xff]
  %v898 = vld [vmem:[#allocation2 + $0x40] sm:$0xff]
  %v899 = vld [vmem:[#allocation2 + $0x50] sm:$0xff]
  %v900 = vld [vmem:[#allocation2 + $0x60] sm:$0xff]
  %v901 = vld [vmem:[#allocation2 + $0x70] sm:$0xff]
  %v902 = vld [vmem:[#allocation2 + $0xa0] sm:$0xff]
  %v903 = vld [vmem:[#allocation2 + $0xb0] sm:$0xff]
  %v904 = vld [vmem:[#allocation2 + $0xc0] sm:$0xff]
  %v905 = vld [vmem:[#allocation2 + $0xd0] sm:$0xff]
  %v906 = vld [vmem:[#allocation2 + $0xe0] sm:$0xff]
  %v907 = vld [vmem:[#allocation2 + $0xf0] sm:$0xff]
  %v908 = vld [vmem:[#allocation2 + $0x100] sm:$0xff]
  %v909 = vld [vmem:[#allocation2 + $0x110] sm:$0xff]
  %v910 = vld [vmem:[#allocation2 + $0x1] sm:$0xff]
  %v911 = vld [vmem:[#allocation2 + $0x11] sm:$0xff]
  %v912 = vld [vmem:[#allocation2 + $0x21] sm:$0xff]
  %v913 = vld [vmem:[#allocation2 + $0x31] sm:$0xff]
  %v914 = vld [vmem:[#allocation2 + $0x41] sm:$0xff]
  %v915 = vld [vmem:[#allocation2 + $0x51] sm:$0xff]
  %v916 = vld [vmem:[#allocation2 + $0x61] sm:$0xff]
  %v917 = vld [vmem:[#allocation2 + $0x71] sm:$0xff]
  %v918 = vld [vmem:[#allocation2 + $0xa1] sm:$0xff]
  %v919 = vld [vmem:[#allocation2 + $0xb1] sm:$0xff]
  %v920 = vld [vmem:[#allocation2 + $0xc1] sm:$0xff]
  %v921 = vld [vmem:[#allocation2 + $0xd1] sm:$0xff]
  %v922 = vld [vmem:[#allocation2 + $0xe1] sm:$0xff]
  %v923 = vld [vmem:[#allocation2 + $0xf1] sm:$0xff]
  %v924 = vld [vmem:[#allocation2 + $0x101] sm:$0xff]
  %v925 = vld [vmem:[#allocation2 + $0x111] sm:$0xff]
  %v926 = vld [vmem:[#allocation2 + $0x2] sm:$0xff]
  %v927 = vld [vmem:[#allocation2 + $0x12] sm:$0xff]
  %v928 = vld [vmem:[#allocation2 + $0x22] sm:$0xff]
  %v929 = vld [vmem:[#allocation2 + $0x32] sm:$0xff]
  %v930 = vld [vmem:[#allocation2 + $0x42] sm:$0xff]
  %v931 = vld [vmem:[#allocation2 + $0x52] sm:$0xff]
  %v932 = vld [vmem:[#allocation2 + $0x62] sm:$0xff]
  %v933 = vld [vmem:[#allocation2 + $0x72] sm:$0xff]
  %v934 = vld [vmem:[#allocation2 + $0xa2] sm:$0xff]
  %v935 = vld [vmem:[#allocation2 + $0xb2] sm:$0xff]
  %v936 = vld [vmem:[#allocation2 + $0xc2] sm:$0xff]
  %v937 = vld [vmem:[#allocation2 + $0xd2] sm:$0xff]
  %v938 = vld [vmem:[#allocation2 + $0xe2] sm:$0xff]
  %v939 = vld [vmem:[#allocation2 + $0xf2] sm:$0xff]
  %v940 = vld [vmem:[#allocation2 + $0x102] sm:$0xff]
  %v941 = vld [vmem:[#allocation2 + $0x112] sm:$0xff]
  %v942 = vld [vmem:[%s877] sm:$0xff]
  %v943 = vld [vmem:[%s877 + $0x10] sm:$0xff]
  %v944 = vld [vmem:[%s877 + $0x20] sm:$0xff]
  %v945 = vld [vmem:[%s877 + $0x30] sm:$0xff]
  %v946 = vld [vmem:[%s877 + $0x40] sm:$0xff]
  %v947 = vld [vmem:[%s877 + $0x50] sm:$0xff]
  %v948 = vld [vmem:[%s877 + $0x60] sm:$0xff]
  %v949 = vld [vmem:[%s877 + $0x70] sm:$0xff]
  %v950 = vld [vmem:[%s877 + $0xa0] sm:$0xff]
  %v951 = vld [vmem:[%s877 + $0xb0] sm:$0xff]
  %v952 = vld [vmem:[%s877 + $0xc0] sm:$0xff]
  %v953 = vld [vmem:[%s877 + $0xd0] sm:$0xff]
  %v954 = vld [vmem:[%s877 + $0xe0] sm:$0xff]
  %v955 = vld [vmem:[%s877 + $0xf0] sm:$0xff]
  %v956 = vld [vmem:[%s877 + $0x100] sm:$0xff]
  %v957 = vld [vmem:[%s877 + $0x110] sm:$0xff]
  %v958 = vld [vmem:[%s877 + $0x1] sm:$0xff]
  %v959 = vld [vmem:[%s877 + $0x11] sm:$0xff]
  %v960 = vld [vmem:[%s877 + $0x21] sm:$0xff]
  %v961 = vld [vmem:[%s877 + $0x31] sm:$0xff]
  %v962 = vld [vmem:[%s877 + $0x41] sm:$0xff]
  %v963 = vld [vmem:[%s877 + $0x51] sm:$0xff]
  %v964 = vld [vmem:[%s877 + $0x61] sm:$0xff]
  %v965 = vld [vmem:[%s877 + $0x71] sm:$0xff]
  %v966 = vld [vmem:[%s877 + $0xa1] sm:$0xff]
  %v967 = vld [vmem:[%s877 + $0xb1] sm:$0xff]
  %v968 = vld [vmem:[%s877 + $0xc1] sm:$0xff]
  %v969 = vld [vmem:[%s877 + $0xd1] sm:$0xff]
  %v970 = vld [vmem:[%s877 + $0xe1] sm:$0xff]
  %v971 = vld [vmem:[%s877 + $0xf1] sm:$0xff]
  %v972 = vld [vmem:[%s877 + $0x101] sm:$0xff]
  %v973 = vld [vmem:[%s877 + $0x111] sm:$0xff]
  %v974 = vld [vmem:[%s877 + $0x2] sm:$0xff]
  %v975 = vld [vmem:[%s877 + $0x12] sm:$0xff]
  %v976 = vld [vmem:[%s877 + $0x22] sm:$0xff]
  %v977 = vld [vmem:[%s877 + $0x32] sm:$0xff]
  %v978 = vld [vmem:[%s877 + $0x42] sm:$0xff]
  %v979 = vld [vmem:[%s877 + $0x52] sm:$0xff]
  %v980 = vld [vmem:[%s877 + $0x62] sm:$0xff]
  %v981 = vld [vmem:[%s877 + $0x72] sm:$0xff]
  %v982 = vld [vmem:[%s877 + $0xa2] sm:$0xff]
  %v983 = vld [vmem:[%s877 + $0xb2] sm:$0xff]
  %v984 = vld [vmem:[%s877 + $0xc2] sm:$0xff]
  %v985 = vld [vmem:[%s877 + $0xd2] sm:$0xff]
  %v986 = vld [vmem:[%s877 + $0xe2] sm:$0xff]
  %v987 = vld [vmem:[%s877 + $0xf2] sm:$0xff]
  %v988 = vld [vmem:[%s877 + $0x102] sm:$0xff]
  %v989 = vld [vmem:[%s877 + $0x112] sm:$0xff]
  %s990 = scalar_lea.vmem [#allocation2], 32
  %v991 = vld [vmem:[%s990] sm:$0xff]
  %v992 = vld [vmem:[%s990 + $0x10] sm:$0xff]
  %v993 = vld [vmem:[%s990 + $0x20] sm:$0xff]
  %v994 = vld [vmem:[%s990 + $0x30] sm:$0xff]
  %v995 = vld [vmem:[%s990 + $0x40] sm:$0xff]
  %v996 = vld [vmem:[%s990 + $0x50] sm:$0xff]
  %v997 = vld [vmem:[%s990 + $0x60] sm:$0xff]
  %v998 = vld [vmem:[%s990 + $0x70] sm:$0xff]
  %v999 = vld [vmem:[%s990 + $0xa0] sm:$0xff]
  %v1000 = vld [vmem:[%s990 + $0xb0] sm:$0xff]
  %v1001 = vld [vmem:[%s990 + $0xc0] sm:$0xff]
  %v1002 = vld [vmem:[%s990 + $0xd0] sm:$0xff]
  %v1003 = vld [vmem:[%s990 + $0xe0] sm:$0xff]
  %v1004 = vld [vmem:[%s990 + $0xf0] sm:$0xff]
  %v1005 = vld [vmem:[%s990 + $0x100] sm:$0xff]
  %v1006 = vld [vmem:[%s990 + $0x110] sm:$0xff]
  %v1007 = vld [vmem:[%s990 + $0x1] sm:$0xff]
  %v1008 = vld [vmem:[%s990 + $0x11] sm:$0xff]
  %v1009 = vld [vmem:[%s990 + $0x21] sm:$0xff]
  %v1010 = vld [vmem:[%s990 + $0x31] sm:$0xff]
  %v1011 = vld [vmem:[%s990 + $0x41] sm:$0xff]
  %v1012 = vld [vmem:[%s990 + $0x51] sm:$0xff]
  %v1013 = vld [vmem:[%s990 + $0x61] sm:$0xff]
  %v1014 = vld [vmem:[%s990 + $0x71] sm:$0xff]
  %v1015 = vld [vmem:[%s990 + $0xa1] sm:$0xff]
  %v1016 = vld [vmem:[%s990 + $0xb1] sm:$0xff]
  %v1017 = vld [vmem:[%s990 + $0xc1] sm:$0xff]
  %v1018 = vld [vmem:[%s990 + $0xd1] sm:$0xff]
  %v1019 = vld [vmem:[%s990 + $0xe1] sm:$0xff]
  %v1020 = vld [vmem:[%s990 + $0xf1] sm:$0xff]
  %v1021 = vld [vmem:[%s990 + $0x101] sm:$0xff]
  %v1022 = vld [vmem:[%s990 + $0x111] sm:$0xff]
  %v1023 = vld [vmem:[%s990 + $0x2] sm:$0xff]
  %v1024 = vld [vmem:[%s990 + $0x12] sm:$0xff]
  %v1025 = vld [vmem:[%s990 + $0x22] sm:$0xff]
  %v1026 = vld [vmem:[%s990 + $0x32] sm:$0xff]
  %v1027 = vld [vmem:[%s990 + $0x42] sm:$0xff]
  %v1028 = vld [vmem:[%s990 + $0x52] sm:$0xff]
  %v1029 = vld [vmem:[%s990 + $0x62] sm:$0xff]
  %v1030 = vld [vmem:[%s990 + $0x72] sm:$0xff]
  %v1031 = vld [vmem:[%s990 + $0xa2] sm:$0xff]
  %v1032 = vld [vmem:[%s990 + $0xb2] sm:$0xff]
  %v1033 = vld [vmem:[%s990 + $0xc2] sm:$0xff]
  %v1034 = vld [vmem:[%s990 + $0xd2] sm:$0xff]
  %v1035 = vld [vmem:[%s990 + $0xe2] sm:$0xff]
  %v1036 = vld [vmem:[%s990 + $0xf2] sm:$0xff]
  %v1037 = vld [vmem:[%s990 + $0x102] sm:$0xff]
  %v1038 = vld [vmem:[%s990 + $0x112] sm:$0xff]
  %1055 = vrot.lane.b32.xlu0 %v910, 16
  %v1056 = vpop.permute.xlu0 %1055
  %1057 = vrot.lane.b32.xlu0 %v911, 16
  %v1058 = vpop.permute.xlu0 %1057
  %1059 = vrot.lane.b32.xlu0 %v912, 16
  %v1060 = vpop.permute.xlu0 %1059
  %1061 = vrot.lane.b32.xlu0 %v913, 16
  %v1062 = vpop.permute.xlu0 %1061
  %1063 = vrot.lane.b32.xlu0 %v914, 16
  %v1064 = vpop.permute.xlu0 %1063
  %1065 = vrot.lane.b32.xlu0 %v915, 16
  %v1066 = vpop.permute.xlu0 %1065
  %1067 = vrot.lane.b32.xlu0 %v916, 16
  %v1068 = vpop.permute.xlu0 %1067
  %1069 = vrot.lane.b32.xlu0 %v917, 16
  %v1070 = vpop.permute.xlu0 %1069
  %1071 = vrot.lane.b32.xlu0 %v918, 16
  %v1072 = vpop.permute.xlu0 %1071
  %1073 = vrot.lane.b32.xlu0 %v919, 16
  %v1074 = vpop.permute.xlu0 %1073
  %1075 = vrot.lane.b32.xlu0 %v920, 16
  %v1076 = vpop.permute.xlu0 %1075
  %1077 = vrot.lane.b32.xlu0 %v921, 16
  %v1078 = vpop.permute.xlu0 %1077
  %1079 = vrot.lane.b32.xlu0 %v922, 16
  %v1080 = vpop.permute.xlu0 %1079
  %1081 = vrot.lane.b32.xlu0 %v923, 16
  %v1082 = vpop.permute.xlu0 %1081
  %1083 = vrot.lane.b32.xlu0 %v924, 16
  %v1084 = vpop.permute.xlu0 %1083
  %1085 = vrot.lane.b32.xlu0 %v925, 16
  %v1086 = vpop.permute.xlu0 %1085
  %1119 = vrot.lane.b32.xlu0 %v926, 32
  %v1120 = vpop.permute.xlu0 %1119
  %1121 = vrot.lane.b32.xlu0 %v927, 32
  %v1122 = vpop.permute.xlu0 %1121
  %1123 = vrot.lane.b32.xlu0 %v928, 32
  %v1124 = vpop.permute.xlu0 %1123
  %1125 = vrot.lane.b32.xlu0 %v929, 32
  %v1126 = vpop.permute.xlu0 %1125
  %1127 = vrot.lane.b32.xlu0 %v930, 32
  %v1128 = vpop.permute.xlu0 %1127
  %1129 = vrot.lane.b32.xlu0 %v931, 32
  %v1130 = vpop.permute.xlu0 %1129
  %1131 = vrot.lane.b32.xlu0 %v932, 32
  %v1132 = vpop.permute.xlu0 %1131
  %1133 = vrot.lane.b32.xlu0 %v933, 32
  %v1134 = vpop.permute.xlu0 %1133
  %1135 = vrot.lane.b32.xlu0 %v934, 32
  %v1136 = vpop.permute.xlu0 %1135
  %1137 = vrot.lane.b32.xlu0 %v935, 32
  %v1138 = vpop.permute.xlu0 %1137
  %1139 = vrot.lane.b32.xlu0 %v936, 32
  %v1140 = vpop.permute.xlu0 %1139
  %1141 = vrot.lane.b32.xlu0 %v937, 32
  %v1142 = vpop.permute.xlu0 %1141
  %1143 = vrot.lane.b32.xlu0 %v938, 32
  %v1144 = vpop.permute.xlu0 %1143
  %1145 = vrot.lane.b32.xlu0 %v939, 32
  %v1146 = vpop.permute.xlu0 %1145
  %1147 = vrot.lane.b32.xlu0 %v940, 32
  %v1148 = vpop.permute.xlu0 %1147
  %1149 = vrot.lane.b32.xlu0 %v941, 32
  %v1150 = vpop.permute.xlu0 %1149
  %1183 = vrot.lane.b32.xlu0 %v942, 48
  %v1184 = vpop.permute.xlu0 %1183
  %1185 = vrot.lane.b32.xlu0 %v943, 48
  %v1186 = vpop.permute.xlu0 %1185
  %1187 = vrot.lane.b32.xlu0 %v944, 48
  %v1188 = vpop.permute.xlu0 %1187
  %1189 = vrot.lane.b32.xlu0 %v945, 48
  %v1190 = vpop.permute.xlu0 %1189
  %1191 = vrot.lane.b32.xlu0 %v946, 48
  %v1192 = vpop.permute.xlu0 %1191
  %1193 = vrot.lane.b32.xlu0 %v947, 48
  %v1194 = vpop.permute.xlu0 %1193
  %1195 = vrot.lane.b32.xlu0 %v948, 48
  %v1196 = vpop.permute.xlu0 %1195
  %1197 = vrot.lane.b32.xlu0 %v949, 48
  %v1198 = vpop.permute.xlu0 %1197
  %1199 = vrot.lane.b32.xlu0 %v950, 48
  %v1200 = vpop.permute.xlu0 %1199
  %1201 = vrot.lane.b32.xlu0 %v951, 48
  %v1202 = vpop.permute.xlu0 %1201
  %1203 = vrot.lane.b32.xlu0 %v952, 48
  %v1204 = vpop.permute.xlu0 %1203
  %1205 = vrot.lane.b32.xlu0 %v953, 48
  %v1206 = vpop.permute.xlu0 %1205
  %1207 = vrot.lane.b32.xlu0 %v954, 48
  %v1208 = vpop.permute.xlu0 %1207
  %1209 = vrot.lane.b32.xlu0 %v955, 48
  %v1210 = vpop.permute.xlu0 %1209
  %1211 = vrot.lane.b32.xlu0 %v956, 48
  %v1212 = vpop.permute.xlu0 %1211
  %1213 = vrot.lane.b32.xlu0 %v957, 48
  %v1214 = vpop.permute.xlu0 %1213
  %1247 = vrot.lane.b32.xlu0 %v958, 64
  %v1248 = vpop.permute.xlu0 %1247
  %1249 = vrot.lane.b32.xlu0 %v959, 64
  %v1250 = vpop.permute.xlu0 %1249
  %1251 = vrot.lane.b32.xlu0 %v960, 64
  %v1252 = vpop.permute.xlu0 %1251
  %1253 = vrot.lane.b32.xlu0 %v961, 64
  %v1254 = vpop.permute.xlu0 %1253
  %1255 = vrot.lane.b32.xlu0 %v962, 64
  %v1256 = vpop.permute.xlu0 %1255
  %1257 = vrot.lane.b32.xlu0 %v963, 64
  %v1258 = vpop.permute.xlu0 %1257
  %1259 = vrot.lane.b32.xlu0 %v964, 64
  %v1260 = vpop.permute.xlu0 %1259
  %1261 = vrot.lane.b32.xlu0 %v965, 64
  %v1262 = vpop.permute.xlu0 %1261
  %1263 = vrot.lane.b32.xlu0 %v966, 64
  %v1264 = vpop.permute.xlu0 %1263
  %1265 = vrot.lane.b32.xlu0 %v967, 64
  %v1266 = vpop.permute.xlu0 %1265
  %1267 = vrot.lane.b32.xlu0 %v968, 64
  %v1268 = vpop.permute.xlu0 %1267
  %1269 = vrot.lane.b32.xlu0 %v969, 64
  %v1270 = vpop.permute.xlu0 %1269
  %1271 = vrot.lane.b32.xlu0 %v970, 64
  %v1272 = vpop.permute.xlu0 %1271
  %1273 = vrot.lane.b32.xlu0 %v971, 64
  %v1274 = vpop.permute.xlu0 %1273
  %1275 = vrot.lane.b32.xlu0 %v972, 64
  %v1276 = vpop.permute.xlu0 %1275
  %1277 = vrot.lane.b32.xlu0 %v973, 64
  %v1278 = vpop.permute.xlu0 %1277
  %1311 = vrot.lane.b32.xlu0 %v974, 80
  %v1312 = vpop.permute.xlu0 %1311
  %1313 = vrot.lane.b32.xlu0 %v975, 80
  %v1314 = vpop.permute.xlu0 %1313
  %1315 = vrot.lane.b32.xlu0 %v976, 80
  %v1316 = vpop.permute.xlu0 %1315
  %1317 = vrot.lane.b32.xlu0 %v977, 80
  %v1318 = vpop.permute.xlu0 %1317
  %1319 = vrot.lane.b32.xlu0 %v978, 80
  %v1320 = vpop.permute.xlu0 %1319
  %1321 = vrot.lane.b32.xlu0 %v979, 80
  %v1322 = vpop.permute.xlu0 %1321
  %1323 = vrot.lane.b32.xlu0 %v980, 80
  %v1324 = vpop.permute.xlu0 %1323
  %1325 = vrot.lane.b32.xlu0 %v981, 80
  %v1326 = vpop.permute.xlu0 %1325
  %1327 = vrot.lane.b32.xlu0 %v982, 80
  %v1328 = vpop.permute.xlu0 %1327
  %1329 = vrot.lane.b32.xlu0 %v983, 80
  %v1330 = vpop.permute.xlu0 %1329
  %1331 = vrot.lane.b32.xlu0 %v984, 80
  %v1332 = vpop.permute.xlu0 %1331
  %1333 = vrot.lane.b32.xlu0 %v985, 80
  %v1334 = vpop.permute.xlu0 %1333
  %1335 = vrot.lane.b32.xlu0 %v986, 80
  %v1336 = vpop.permute.xlu0 %1335
  %1337 = vrot.lane.b32.xlu0 %v987, 80
  %v1338 = vpop.permute.xlu0 %1337
  %1339 = vrot.lane.b32.xlu0 %v988, 80
  %v1340 = vpop.permute.xlu0 %1339
  %1341 = vrot.lane.b32.xlu0 %v989, 80
  %v1342 = vpop.permute.xlu0 %1341
  %1375 = vrot.lane.b32.xlu0 %v991, 96
  %v1376 = vpop.permute.xlu0 %1375
  %1377 = vrot.lane.b32.xlu0 %v992, 96
  %v1378 = vpop.permute.xlu0 %1377
  %1379 = vrot.lane.b32.xlu0 %v993, 96
  %v1380 = vpop.permute.xlu0 %1379
  %1381 = vrot.lane.b32.xlu0 %v994, 96
  %v1382 = vpop.permute.xlu0 %1381
  %1383 = vrot.lane.b32.xlu0 %v995, 96
  %v1384 = vpop.permute.xlu0 %1383
  %1385 = vrot.lane.b32.xlu0 %v996, 96
  %v1386 = vpop.permute.xlu0 %1385
  %1387 = vrot.lane.b32.xlu0 %v997, 96
  %v1388 = vpop.permute.xlu0 %1387
  %1389 = vrot.lane.b32.xlu0 %v998, 96
  %v1390 = vpop.permute.xlu0 %1389
  %1391 = vrot.lane.b32.xlu0 %v999, 96
  %v1392 = vpop.permute.xlu0 %1391
  %1393 = vrot.lane.b32.xlu0 %v1000, 96
  %v1394 = vpop.permute.xlu0 %1393
  %1395 = vrot.lane.b32.xlu0 %v1001, 96
  %v1396 = vpop.permute.xlu0 %1395
  %1397 = vrot.lane.b32.xlu0 %v1002, 96
  %v1398 = vpop.permute.xlu0 %1397
  %1399 = vrot.lane.b32.xlu0 %v1003, 96
  %v1400 = vpop.permute.xlu0 %1399
  %1401 = vrot.lane.b32.xlu0 %v1004, 96
  %v1402 = vpop.permute.xlu0 %1401
  %1403 = vrot.lane.b32.xlu0 %v1005, 96
  %v1404 = vpop.permute.xlu0 %1403
  %1405 = vrot.lane.b32.xlu0 %v1006, 96
  %v1406 = vpop.permute.xlu0 %1405
  %1439 = vrot.lane.b32.xlu0 %v1007, 112
  %v1440 = vpop.permute.xlu0 %1439
  %1441 = vrot.lane.b32.xlu0 %v1008, 112
  %v1442 = vpop.permute.xlu0 %1441
  %1443 = vrot.lane.b32.xlu0 %v1009, 112
  %v1444 = vpop.permute.xlu0 %1443
  %1445 = vrot.lane.b32.xlu0 %v1010, 112
  %v1446 = vpop.permute.xlu0 %1445
  %1447 = vrot.lane.b32.xlu0 %v1011, 112
  %v1448 = vpop.permute.xlu0 %1447
  %1449 = vrot.lane.b32.xlu0 %v1012, 112
  %v1450 = vpop.permute.xlu0 %1449
  %1451 = vrot.lane.b32.xlu0 %v1013, 112
  %v1452 = vpop.permute.xlu0 %1451
  %1453 = vrot.lane.b32.xlu0 %v1014, 112
  %v1454 = vpop.permute.xlu0 %1453
  %1455 = vrot.lane.b32.xlu0 %v1015, 112
  %v1456 = vpop.permute.xlu0 %1455
  %1457 = vrot.lane.b32.xlu0 %v1016, 112
  %v1458 = vpop.permute.xlu0 %1457
  %1459 = vrot.lane.b32.xlu0 %v1017, 112
  %v1460 = vpop.permute.xlu0 %1459
  %1461 = vrot.lane.b32.xlu0 %v1018, 112
  %v1462 = vpop.permute.xlu0 %1461
  %1463 = vrot.lane.b32.xlu0 %v1019, 112
  %v1464 = vpop.permute.xlu0 %1463
  %1465 = vrot.lane.b32.xlu0 %v1020, 112
  %v1466 = vpop.permute.xlu0 %1465
  %1467 = vrot.lane.b32.xlu0 %v1021, 112
  %v1468 = vpop.permute.xlu0 %1467
  %1469 = vrot.lane.b32.xlu0 %v1022, 112
  %v1470 = vpop.permute.xlu0 %1469
  %v1487 = vsel %vm684, %v894, %v1056
  %v1488 = vsel %vm684, %v895, %v1058
  %v1489 = vsel %vm684, %v896, %v1060
  %v1490 = vsel %vm684, %v897, %v1062
  %v1491 = vsel %vm684, %v898, %v1064
  %v1492 = vsel %vm684, %v899, %v1066
  %v1493 = vsel %vm684, %v900, %v1068
  %v1494 = vsel %vm684, %v901, %v1070
  %v1495 = vsel %vm684, %v902, %v1072
  %v1496 = vsel %vm684, %v903, %v1074
  %v1497 = vsel %vm684, %v904, %v1076
  %v1498 = vsel %vm684, %v905, %v1078
  %v1499 = vsel %vm684, %v906, %v1080
  %v1500 = vsel %vm684, %v907, %v1082
  %v1501 = vsel %vm684, %v908, %v1084
  %v1502 = vsel %vm684, %v909, %v1086
  %vm1503 = vcmask 261120
  %v1504 = vsel %vm1503, %v1487, %v1120
  %v1505 = vsel %vm1503, %v1488, %v1122
  %v1506 = vsel %vm1503, %v1489, %v1124
  %v1507 = vsel %vm1503, %v1490, %v1126
  %v1508 = vsel %vm1503, %v1491, %v1128
  %v1509 = vsel %vm1503, %v1492, %v1130
  %v1510 = vsel %vm1503, %v1493, %v1132
  %v1511 = vsel %vm1503, %v1494, %v1134
  %v1512 = vsel %vm1503, %v1495, %v1136
  %v1513 = vsel %vm1503, %v1496, %v1138
  %v1514 = vsel %vm1503, %v1497, %v1140
  %v1515 = vsel %vm1503, %v1498, %v1142
  %v1516 = vsel %vm1503, %v1499, %v1144
  %v1517 = vsel %vm1503, %v1500, %v1146
  %v1518 = vsel %vm1503, %v1501, %v1148
  %v1519 = vsel %vm1503, %v1502, %v1150
  %vm1520 = vcmask 392192
  %v1521 = vsel %vm1520, %v1504, %v1184
  %v1522 = vsel %vm1520, %v1505, %v1186
  %v1523 = vsel %vm1520, %v1506, %v1188
  %v1524 = vsel %vm1520, %v1507, %v1190
  %v1525 = vsel %vm1520, %v1508, %v1192
  %v1526 = vsel %vm1520, %v1509, %v1194
  %v1527 = vsel %vm1520, %v1510, %v1196
  %v1528 = vsel %vm1520, %v1511, %v1198
  %v1529 = vsel %vm1520, %v1512, %v1200
  %v1530 = vsel %vm1520, %v1513, %v1202
  %v1531 = vsel %vm1520, %v1514, %v1204
  %v1532 = vsel %vm1520, %v1515, %v1206
  %v1533 = vsel %vm1520, %v1516, %v1208
  %v1534 = vsel %vm1520, %v1517, %v1210
  %v1535 = vsel %vm1520, %v1518, %v1212
  %v1536 = vsel %vm1520, %v1519, %v1214
  %vm1537 = vcmask 523264
  %v1538 = vsel %vm1537, %v1521, %v1248
  %v1539 = vsel %vm1537, %v1522, %v1250
  %v1540 = vsel %vm1537, %v1523, %v1252
  %v1541 = vsel %vm1537, %v1524, %v1254
  %v1542 = vsel %vm1537, %v1525, %v1256
  %v1543 = vsel %vm1537, %v1526, %v1258
  %v1544 = vsel %vm1537, %v1527, %v1260
  %v1545 = vsel %vm1537, %v1528, %v1262
  %v1546 = vsel %vm1537, %v1529, %v1264
  %v1547 = vsel %vm1537, %v1530, %v1266
  %v1548 = vsel %vm1537, %v1531, %v1268
  %v1549 = vsel %vm1537, %v1532, %v1270
  %v1550 = vsel %vm1537, %v1533, %v1272
  %v1551 = vsel %vm1537, %v1534, %v1274
  %v1552 = vsel %vm1537, %v1535, %v1276
  %v1553 = vsel %vm1537, %v1536, %v1278
  %vm1554 = vcmask 654336
  %v1555 = vsel %vm1554, %v1538, %v1312
  %v1556 = vsel %vm1554, %v1539, %v1314
  %v1557 = vsel %vm1554, %v1540, %v1316
  %v1558 = vsel %vm1554, %v1541, %v1318
  %v1559 = vsel %vm1554, %v1542, %v1320
  %v1560 = vsel %vm1554, %v1543, %v1322
  %v1561 = vsel %vm1554, %v1544, %v1324
  %v1562 = vsel %vm1554, %v1545, %v1326
  %v1563 = vsel %vm1554, %v1546, %v1328
  %v1564 = vsel %vm1554, %v1547, %v1330
  %v1565 = vsel %vm1554, %v1548, %v1332
  %v1566 = vsel %vm1554, %v1549, %v1334
  %v1567 = vsel %vm1554, %v1550, %v1336
  %v1568 = vsel %vm1554, %v1551, %v1338
  %v1569 = vsel %vm1554, %v1552, %v1340
  %v1570 = vsel %vm1554, %v1553, %v1342
  %vm1571 = vcmask 785408
  %v1572 = vsel %vm1571, %v1555, %v1376
  %v1573 = vsel %vm1571, %v1556, %v1378
  %v1574 = vsel %vm1571, %v1557, %v1380
  %v1575 = vsel %vm1571, %v1558, %v1382
  %v1576 = vsel %vm1571, %v1559, %v1384
  %v1577 = vsel %vm1571, %v1560, %v1386
  %v1578 = vsel %vm1571, %v1561, %v1388
  %v1579 = vsel %vm1571, %v1562, %v1390
  %v1580 = vsel %vm1571, %v1563, %v1392
  %v1581 = vsel %vm1571, %v1564, %v1394
  %v1582 = vsel %vm1571, %v1565, %v1396
  %v1583 = vsel %vm1571, %v1566, %v1398
  %v1584 = vsel %vm1571, %v1567, %v1400
  %v1585 = vsel %vm1571, %v1568, %v1402
  %v1586 = vsel %vm1571, %v1569, %v1404
  %v1587 = vsel %vm1571, %v1570, %v1406
  %vm1588 = vcmask 916480
  %v1589 = vsel %vm1588, %v1572, %v1440
  %v1590 = vsel %vm1588, %v1573, %v1442
  %v1591 = vsel %vm1588, %v1574, %v1444
  %v1592 = vsel %vm1588, %v1575, %v1446
  %v1593 = vsel %vm1588, %v1576, %v1448
  %v1594 = vsel %vm1588, %v1577, %v1450
  %v1595 = vsel %vm1588, %v1578, %v1452
  %v1596 = vsel %vm1588, %v1579, %v1454
  %v1597 = vsel %vm1588, %v1580, %v1456
  %v1598 = vsel %vm1588, %v1581, %v1458
  %v1599 = vsel %vm1588, %v1582, %v1460
  %v1600 = vsel %vm1588, %v1583, %v1462
  %v1601 = vsel %vm1588, %v1584, %v1464
  %v1602 = vsel %vm1588, %v1585, %v1466
  %v1603 = vsel %vm1588, %v1586, %v1468
  %v1604 = vsel %vm1588, %v1587, %v1470
  %v1605 = vld [vmem:[%s3] sm:$0xff]
  %v1606 = vld [vmem:[%s3 + $0x8] sm:$0xff]
  %v1607 = vld [vmem:[%s3 + $0x10] sm:$0xff]
  %v1608 = vld [vmem:[%s3 + $0x18] sm:$0xff]
  %v1609 = vld [vmem:[%s3 + $0x20] sm:$0xff]
  %v1610 = vld [vmem:[%s3 + $0x28] sm:$0xff]
  %v1611 = vld [vmem:[%s3 + $0x30] sm:$0xff]
  %v1612 = vld [vmem:[%s3 + $0x38] sm:$0xff]
  %v1613 = vld [vmem:[%s3 + $0x40] sm:$0xff]
  %v1614 = vld [vmem:[%s3 + $0x48] sm:$0xff]
  %v1615 = vld [vmem:[%s3 + $0x50] sm:$0xff]
  %v1616 = vld [vmem:[%s3 + $0x58] sm:$0xff]
  %v1617 = vld [vmem:[%s3 + $0x60] sm:$0xff]
  %v1618 = vld [vmem:[%s3 + $0x68] sm:$0xff]
  %v1619 = vld [vmem:[%s3 + $0x70] sm:$0xff]
  %v1620 = vld [vmem:[%s3 + $0x78] sm:$0xff]
  %v1621 = vld [vmem:[%s3 + $0x80] sm:$0xff]
  %v1622 = vld [vmem:[%s3 + $0x88] sm:$0xff]
  %v1623 = vld [vmem:[%s4] sm:$0x1]
  %v1625 = vlaneseq
  %v1626 = vshrl.u32 %v1625, 7
  %v1627 = vsub.s32 0, %v1626
  %v1628 = vrot.slane %v1623, %v1627
  %v1631 = vsel %vm684, %v1023, 0
  %v1634 = vsel %vm684, %v1024, 0
  %v1637 = vsel %vm684, %v1025, 0
  %v1640 = vsel %vm684, %v1026, 0
  %v1643 = vsel %vm684, %v1027, 0
  %v1646 = vsel %vm684, %v1028, 0
  %v1649 = vsel %vm684, %v1029, 0
  %v1652 = vsel %vm684, %v1030, 0
  %v1655 = vsel %vm684, %v1031, 0
  %v1658 = vsel %vm684, %v1032, 0
  %v1661 = vsel %vm684, %v1033, 0
  %v1664 = vsel %vm684, %v1034, 0
  %v1667 = vsel %vm684, %v1035, 0
  %v1670 = vsel %vm684, %v1036, 0
  %v1673 = vsel %vm684, %v1037, 0
  %v1676 = vsel %vm684, %v1038, 0
  %1678 = vmatprep.subr.mxu0 0.0
  %1679 = vmatpush1.msra.mxu0 %v1605
  %1680 = vmatprep.subr.mxu0 0.0
  %1681 = vmatpush1.msra.mxu0 %v1606
  %1682 = vmatprep.subr.mxu0 0.0
  %1683 = vmatpush1.msra.mxu0 %v1607
  %1684 = vmatprep.subr.mxu0 0.0
  %1685 = vmatpush1.msra.mxu0 %v1608
  %1686 = vmatprep.subr.mxu0 0.0
  %1687 = vmatpush1.msra.mxu0 %v1609
  %1688 = vmatprep.subr.mxu0 0.0
  %1689 = vmatpush1.msra.mxu0 %v1610
  %1690 = vmatprep.subr.mxu0 0.0
  %1691 = vmatpush1.msra.mxu0 %v1611
  %1692 = vmatprep.subr.mxu0 0.0
  %1693 = vmatpush1.msra.mxu0 %v1612
  %1694 = vmatprep.subr.mxu0 0.0
  %1695 = vmatpush1.msra.mxu0 %v1613
  %1696 = vmatprep.subr.mxu0 0.0
  %1697 = vmatpush1.msra.mxu0 %v1614
  %1698 = vmatprep.subr.mxu0 0.0
  %1699 = vmatpush1.msra.mxu0 %v1615
  %1700 = vmatprep.subr.mxu0 0.0
  %1701 = vmatpush1.msra.mxu0 %v1616
  %1702 = vmatprep.subr.mxu0 0.0
  %1703 = vmatpush1.msra.mxu0 %v1617
  %1704 = vmatprep.subr.mxu0 0.0
  %1705 = vmatpush1.msra.mxu0 %v1618
  %1706 = vmatprep.subr.mxu0 0.0
  %1707 = vmatpush1.msra.mxu0 %v1619
  %1708 = vmatprep.subr.mxu0 0.0
  %1709 = vmatpush1.msra.mxu0 %v1620
  %1710 = vmatprep.subr.mxu0 0.0
  %1711 = vmatpush1.msra.mxu0 %v1621
  %1712 = vmatprep.subr.mxu0 0.0
  %1713 = vmatpush1.msra.mxu0 %v1622
  %1714 = vmatprep.subr.mxu0 0.0
  %1715 = vmatpush1.msra.mxu0 0.0
  %1716 = vmatprep.subr.mxu0 0.0
  %1717 = vmatpush1.msra.mxu0 0.0
  %1718 = vmatprep.subr.mxu0 0.0
  %1719 = vmatpush1.msra.mxu0 0.0
  %1720 = vmatprep.subr.mxu0 0.0
  %1721 = vmatpush1.msra.mxu0 0.0
  %1722 = vmatprep.subr.mxu0 0.0
  %1723 = vmatpush1.msra.mxu0 0.0
  %1724 = vmatprep.subr.mxu0 0.0
  %1725 = vmatpush1.msra.mxu0 0.0
  %1726 = vmatprep.subr.mxu0 0.0
  %1727 = vmatpush1.msra.mxu0 0.0
  %1728 = vmatprep.subr.mxu0 0.0
  %1729 = vmatpush1.msra.mxu0 0.0
  %1730 = vmatprep.subr.mxu0 0.0
  %1731 = vmatpush1.msra.mxu0 0.0
  %1732 = vmatprep.subr.mxu0 0.0
  %1733 = vmatpush1.msra.mxu0 0.0
  %1734 = vmatprep.subr.mxu0 0.0
  %1735 = vmatpush1.msra.mxu0 0.0
  %1736 = vmatprep.subr.mxu0 0.0
  %1737 = vmatpush1.msra.mxu0 0.0
  %1738 = vmatprep.subr.mxu0 0.0
  %1739 = vmatpush1.msra.mxu0 0.0
  %1740 = vmatprep.subr.mxu0 0.0
  %1741 = vmatpush1.msra.mxu0 0.0
  %1742 = vmatprep.mubr.f32.mxu0 %v1631
  %1743 = vmatmul.mubr.f32.gmra.mrb[0].mxu0 %v1589
  %v1744 = vpop.f32.mrb[0].mxu0
  %v1745 = vadd.f32 %v1628, %v1744
  %v1746 = vpop.f32.mrb[0].mxu0
  %1747 = vmatprep.mubr.f32.mxu0 %v1634
  %1748 = vmatmul.mubr.f32.gmra.mrb[0].mxu0 %v1590
  %v1749 = vpop.f32.mrb[0].mxu0
  %v1750 = vadd.f32 %v1628, %v1749
  %v1751 = vpop.f32.mrb[0].mxu0
  %1752 = vmatprep.mubr.f32.mxu0 %v1637
  %1753 = vmatmul.mubr.f32.gmra.mrb[0].mxu0 %v1591
  %v1754 = vpop.f32.mrb[0].mxu0
  %v1755 = vadd.f32 %v1628, %v1754
  %v1756 = vpop.f32.mrb[0].mxu0
  %1757 = vmatprep.mubr.f32.mxu0 %v1640
  %1758 = vmatmul.mubr.f32.gmra.mrb[0].mxu0 %v1592
  %v1759 = vpop.f32.mrb[0].mxu0
  %v1760 = vadd.f32 %v1628, %v1759
  %v1761 = vpop.f32.mrb[0].mxu0
  %1762 = vmatprep.mubr.f32.mxu0 %v1643
  %1763 = vmatmul.mubr.f32.gmra.mrb[0].mxu0 %v1593
  %v1764 = vpop.f32.mrb[0].mxu0
  %v1765 = vadd.f32 %v1628, %v1764
  %v1766 = vpop.f32.mrb[0].mxu0
  %1767 = vmatprep.mubr.f32.mxu0 %v1646
  %1768 = vmatmul.mubr.f32.gmra.mrb[0].mxu0 %v1594
  %v1769 = vpop.f32.mrb[0].mxu0
  %v1770 = vadd.f32 %v1628, %v1769
  %v1771 = vpop.f32.mrb[0].mxu0
  %1772 = vmatprep.mubr.f32.mxu0 %v1649
  %1773 = vmatmul.mubr.f32.gmra.mrb[0].mxu0 %v1595
  %v1774 = vpop.f32.mrb[0].mxu0
  %v1775 = vadd.f32 %v1628, %v1774
  %v1776 = vpop.f32.mrb[0].mxu0
  %1777 = vmatprep.mubr.f32.mxu0 %v1652
  %1778 = vmatmul.mubr.f32.gmra.mrb[0].mxu0 %v1596
  %v1779 = vpop.f32.mrb[0].mxu0
  %v1780 = vadd.f32 %v1628, %v1779
  %v1781 = vpop.f32.mrb[0].mxu0
  %1782 = vmatprep.mubr.f32.mxu0 %v1655
  %1783 = vmatmul.mubr.f32.gmra.mrb[0].mxu0 %v1597
  %v1784 = vpop.f32.mrb[0].mxu0
  %v1785 = vadd.f32 %v1628, %v1784
  %v1786 = vpop.f32.mrb[0].mxu0
  %1787 = vmatprep.mubr.f32.mxu0 %v1658
  %1788 = vmatmul.mubr.f32.gmra.mrb[0].mxu0 %v1598
  %v1789 = vpop.f32.mrb[0].mxu0
  %v1790 = vadd.f32 %v1628, %v1789
  %v1791 = vpop.f32.mrb[0].mxu0
  %1792 = vmatprep.mubr.f32.mxu0 %v1661
  %1793 = vmatmul.mubr.f32.gmra.mrb[0].mxu0 %v1599
  %v1794 = vpop.f32.mrb[0].mxu0
  %v1795 = vadd.f32 %v1628, %v1794
  %v1796 = vpop.f32.mrb[0].mxu0
  %1797 = vmatprep.mubr.f32.mxu0 %v1664
  %1798 = vmatmul.mubr.f32.gmra.mrb[0].mxu0 %v1600
  %v1799 = vpop.f32.mrb[0].mxu0
  %v1800 = vadd.f32 %v1628, %v1799
  %v1801 = vpop.f32.mrb[0].mxu0
  %1802 = vmatprep.mubr.f32.mxu0 %v1667
  %1803 = vmatmul.mubr.f32.gmra.mrb[0].mxu0 %v1601
  %v1804 = vpop.f32.mrb[0].mxu0
  %v1805 = vadd.f32 %v1628, %v1804
  %v1806 = vpop.f32.mrb[0].mxu0
  %1807 = vmatprep.mubr.f32.mxu0 %v1670
  %1808 = vmatmul.mubr.f32.gmra.mrb[0].mxu0 %v1602
  %v1809 = vpop.f32.mrb[0].mxu0
  %v1810 = vadd.f32 %v1628, %v1809
  %v1811 = vpop.f32.mrb[0].mxu0
  %1812 = vmatprep.mubr.f32.mxu0 %v1673
  %1813 = vmatmul.mubr.f32.gmra.mrb[0].mxu0 %v1603
  %v1814 = vpop.f32.mrb[0].mxu0
  %v1815 = vadd.f32 %v1628, %v1814
  %v1816 = vpop.f32.mrb[0].mxu0
  %1817 = vmatprep.mubr.f32.mxu0 %v1676
  %1818 = vmatmul.mubr.f32.gmra.mrb[0].mxu0 %v1604
  %v1819 = vpop.f32.mrb[0].mxu0
  %v1820 = vadd.f32 %v1628, %v1819
  %v1821 = vpop.f32.mrb[0].mxu0
  %1822 = vdwg.mxu0
  %v1823 = vmax.f32 %v1745, 0.0
  %v1824 = vmax.f32 %v1750, 0.0
  %v1825 = vmax.f32 %v1755, 0.0
  %v1826 = vmax.f32 %v1760, 0.0
  %v1827 = vmax.f32 %v1765, 0.0
  %v1828 = vmax.f32 %v1770, 0.0
  %v1829 = vmax.f32 %v1775, 0.0
  %v1830 = vmax.f32 %v1780, 0.0
  %v1831 = vmax.f32 %v1785, 0.0
  %v1832 = vmax.f32 %v1790, 0.0
  %v1833 = vmax.f32 %v1795, 0.0
  %v1834 = vmax.f32 %v1800, 0.0
  %v1835 = vmax.f32 %v1805, 0.0
  %v1836 = vmax.f32 %v1810, 0.0
  %v1837 = vmax.f32 %v1815, 0.0
  %v1838 = vmax.f32 %v1820, 0.0
  %v1839 = vsel %vm1503, %v1823, -inf
  %v1840 = vsel %vm1503, %v1824, -inf
  %v1841 = vmax.f32 %v1839, %v1840
  %v1842 = vsel %vm1503, %v1825, -inf
  %v1843 = vsel %vm1503, %v1826, -inf
  %v1844 = vmax.f32 %v1842, %v1843
  %v1845 = vsel %vm1503, %v1827, -inf
  %v1846 = vsel %vm1503, %v1828, -inf
  %v1847 = vmax.f32 %v1845, %v1846
  %v1848 = vsel %vm1503, %v1829, -inf
  %v1849 = vsel %vm1503, %v1830, -inf
  %v1850 = vmax.f32 %v1848, %v1849
  %v1851 = vsel %vm1503, %v1831, -inf
  %v1852 = vsel %vm1503, %v1832, -inf
  %v1853 = vmax.f32 %v1851, %v1852
  %v1854 = vsel %vm1503, %v1833, -inf
  %v1855 = vsel %vm1503, %v1834, -inf
  %v1856 = vmax.f32 %v1854, %v1855
  %v1857 = vsel %vm1503, %v1835, -inf
  %v1858 = vsel %vm1503, %v1836, -inf
  %v1859 = vmax.f32 %v1857, %v1858
  %v1860 = vsel %vm1503, %v1837, -inf
  %v1861 = vsel %vm1503, %v1838, -inf
  %v1862 = vmax.f32 %v1860, %v1861
  %1863 = vst.msk [vmem:[#allocation3] sm:$0xff] %vm1503, %v1841
  %1864 = vst.msk [vmem:[#allocation3 + $0x8] sm:$0xff] %vm1503, %v1844
  %1865 = vst.msk [vmem:[#allocation3 + $0x10] sm:$0xff] %vm1503, %v1847
  %1866 = vst.msk [vmem:[#allocation3 + $0x18] sm:$0xff] %vm1503, %v1850
  %1867 = vst.msk [vmem:[#allocation3 + $0x20] sm:$0xff] %vm1503, %v1853
  %1868 = vst.msk [vmem:[#allocation3 + $0x28] sm:$0xff] %vm1503, %v1856
  %1869 = vst.msk [vmem:[#allocation3 + $0x30] sm:$0xff] %vm1503, %v1859
  %1870 = vst.msk [vmem:[#allocation3 + $0x38] sm:$0xff] %vm1503, %v1862
  %v1871 = vld [vmem:[#allocation3] ss:$2 sm:$0xf]
  %s1872 = scalar_lea.vmem [#allocation3], 8
  %v1873 = vld [vmem:[%s1872] ss:$2 sm:$0xf]
  %s1874 = scalar_lea.vmem [#allocation3], 16
  %v1875 = vld [vmem:[%s1874] ss:$2 sm:$0xf]
  %s1876 = scalar_lea.vmem [#allocation3], 24
  %v1877 = vld [vmem:[%s1876] ss:$2 sm:$0xf]
  %s1878 = scalar_lea.vmem [#allocation3], 32
  %v1879 = vld [vmem:[%s1878] ss:$2 sm:$0xf]
  %s1880 = scalar_lea.vmem [#allocation3], 40
  %v1881 = vld [vmem:[%s1880] ss:$2 sm:$0xf]
  %s1882 = scalar_lea.vmem [#allocation3], 48
  %v1883 = vld [vmem:[%s1882] ss:$2 sm:$0xf]
  %s1884 = scalar_lea.vmem [#allocation3], 56
  %v1885 = vld [vmem:[%s1884] ss:$2 sm:$0xf]
  %s1886 = scalar_lea.vmem [#allocation3], 1
  %v1887 = vld [vmem:[%s1886] ss:$2 sm:$0xf]
  %s1888 = scalar_lea.vmem [#allocation3], 9
  %v1889 = vld [vmem:[%s1888] ss:$2 sm:$0xf]
  %s1890 = scalar_lea.vmem [#allocation3], 17
  %v1891 = vld [vmem:[%s1890] ss:$2 sm:$0xf]
  %s1892 = scalar_lea.vmem [#allocation3], 25
  %v1893 = vld [vmem:[%s1892] ss:$2 sm:$0xf]
  %s1894 = scalar_lea.vmem [#allocation3], 33
  %v1895 = vld [vmem:[%s1894] ss:$2 sm:$0xf]
  %s1896 = scalar_lea.vmem [#allocation3], 41
  %v1897 = vld [vmem:[%s1896] ss:$2 sm:$0xf]
  %s1898 = scalar_lea.vmem [#allocation3], 49
  %v1899 = vld [vmem:[%s1898] ss:$2 sm:$0xf]
  %s1900 = scalar_lea.vmem [#allocation3], 57
  %v1901 = vld [vmem:[%s1900] ss:$2 sm:$0xf]
  %v1902 = vmax.f32 %v1871, %v1887
  %v1903 = vmax.f32 %v1873, %v1889
  %v1904 = vmax.f32 %v1875, %v1891
  %v1905 = vmax.f32 %v1877, %v1893
  %v1906 = vmax.f32 %v1879, %v1895
  %v1907 = vmax.f32 %v1881, %v1897
  %v1908 = vmax.f32 %v1883, %v1899
  %v1909 = vmax.f32 %v1885, %v1901
  %vm1910 = vcmask 257024
  %v1911 = vsel %vm1910, %v1902, 0.0
  %v1912 = vsel %vm1910, %v1903, 0.0
  %v1913 = vadd.f32 %v1911, %v1912
  %v1914 = vsel %vm1910, %v1904, 0.0
  %v1915 = vadd.f32 %v1913, %v1914
  %v1916 = vsel %vm1910, %v1905, 0.0
  %v1917 = vadd.f32 %v1915, %v1916
  %v1918 = vrot.slane %v1917, 4
  %v1919 = vadd.f32 %v1917, %v1918
  %v1920 = vrot.slane %v1919, 2
  %v1921 = vadd.f32 %v1919, %v1920
  %v1922 = vrot.slane %v1921, 1
  %v1923 = vadd.f32 %v1921, %v1922
  %v1924 = vsel %vm1910, %v1906, 0.0
  %v1925 = vsel %vm1910, %v1907, 0.0
  %v1926 = vadd.f32 %v1924, %v1925
  %v1927 = vsel %vm1910, %v1908, 0.0
  %v1928 = vadd.f32 %v1926, %v1927
  %v1929 = vsel %vm1910, %v1909, 0.0
  %v1930 = vadd.f32 %v1928, %v1929
  %v1931 = vrot.slane %v1930, 4
  %v1932 = vadd.f32 %v1930, %v1931
  %v1933 = vrot.slane %v1932, 2
  %v1934 = vadd.f32 %v1932, %v1933
  %v1935 = vrot.slane %v1934, 1
  %v1936 = vadd.f32 %v1934, %v1935
  %v1937 = vmul.f32 %v1923, 0.0625
  %v1938 = vmul.f32 %v1936, 0.0625
  %v1939 = vld [vmem:[%s5] sm:$0xff]
  %v1940 = vld [vmem:[%s5 + $0x8] sm:$0xff]
  %v1941 = vld [vmem:[%s5 + $0x10] sm:$0xff]
  %v1942 = vld [vmem:[%s5 + $0x18] sm:$0xff]
  %v1943 = vld [vmem:[%s6] sm:$0x1]
  %v1945 = vlaneseq
  %v1946 = vshrl.u32 %v1945, 7
  %v1947 = vsub.s32 0, %v1946
  %v1948 = vrot.slane %v1943, %v1947
  %vm1952 = vcmask 1041409
  %v1953 = vsel %vm1952, %v1938, %v1937
  %v1954 = vsel %vm1503, %v1953, 0
  %1956 = vmatprep.subr.mxu0 0.0
  %1957 = vmatpush1.msra.mxu0 %v1939
  %1958 = vmatprep.subr.mxu0 0.0
  %1959 = vmatpush1.msra.mxu0 %v1940
  %1960 = vmatprep.subr.mxu0 0.0
  %1961 = vmatpush1.msra.mxu0 %v1941
  %1962 = vmatprep.subr.mxu0 0.0
  %1963 = vmatpush1.msra.mxu0 %v1942
  %1964 = vmatprep.subr.mxu0 0.0
  %1965 = vmatpush1.msra.mxu0 0.0
  %1966 = vmatprep.subr.mxu0 0.0
  %1967 = vmatpush1.msra.mxu0 0.0
  %1968 = vmatprep.subr.mxu0 0.0
  %1969 = vmatpush1.msra.mxu0 0.0
  %1970 = vmatprep.subr.mxu0 0.0
  %1971 = vmatpush1.msra.mxu0 0.0
  %1972 = vmatprep.subr.mxu0 0.0
  %1973 = vmatpush1.msra.mxu0 0.0
  %1974 = vmatprep.subr.mxu0 0.0
  %1975 = vmatpush1.msra.mxu0 0.0
  %1976 = vmatprep.subr.mxu0 0.0
  %1977 = vmatpush1.msra.mxu0 0.0
  %1978 = vmatprep.subr.mxu0 0.0
  %1979 = vmatpush1.msra.mxu0 0.0
  %1980 = vmatprep.subr.mxu0 0.0
  %1981 = vmatpush1.msra.mxu0 0.0
  %1982 = vmatprep.subr.mxu0 0.0
  %1983 = vmatpush1.msra.mxu0 0.0
  %1984 = vmatprep.subr.mxu0 0.0
  %1985 = vmatpush1.msra.mxu0 0.0
  %1986 = vmatprep.subr.mxu0 0.0
  %1987 = vmatpush1.msra.mxu0 0.0
  %1988 = vmatprep.subr.mxu0 0.0
  %1989 = vmatpush1.msra.mxu0 0.0
  %1990 = vmatprep.subr.mxu0 0.0
  %1991 = vmatpush1.msra.mxu0 0.0
  %1992 = vmatprep.subr.mxu0 0.0
  %1993 = vmatpush1.msra.mxu0 0.0
  %1994 = vmatprep.subr.mxu0 0.0
  %1995 = vmatpush1.msra.mxu0 0.0
  %1996 = vmatprep.subr.mxu0 0.0
  %1997 = vmatpush1.msra.mxu0 0.0
  %1998 = vmatprep.subr.mxu0 0.0
  %1999 = vmatpush1.msra.mxu0 0.0
  %2000 = vmatprep.subr.mxu0 0.0
  %2001 = vmatpush1.msra.mxu0 0.0
  %2002 = vmatprep.subr.mxu0 0.0
  %2003 = vmatpush1.msra.mxu0 0.0
  %2004 = vmatprep.subr.mxu0 0.0
  %2005 = vmatpush1.msra.mxu0 0.0
  %2006 = vmatprep.subr.mxu0 0.0
  %2007 = vmatpush1.msra.mxu0 0.0
  %2008 = vmatprep.subr.mxu0 0.0
  %2009 = vmatpush1.msra.mxu0 0.0
  %2010 = vmatprep.subr.mxu0 0.0
  %2011 = vmatpush1.msra.mxu0 0.0
  %2012 = vmatprep.subr.mxu0 0.0
  %2013 = vmatpush1.msra.mxu0 0.0
  %2014 = vmatprep.subr.mxu0 0.0
  %2015 = vmatpush1.msra.mxu0 0.0
  %2016 = vmatprep.subr.mxu0 0.0
  %2017 = vmatpush1.msra.mxu0 0.0
  %2018 = vmatprep.subr.mxu0 0.0
  %2019 = vmatpush1.msra.mxu0 0.0
  %2020 = vmatprep.mubr.f32.mxu0 0.0
  %2021 = vmatmul.mubr.f32.gmra.mrb[0].mxu0 %v1954
  %v2022 = vpop.f32.mrb[0].mxu0
  %v2023 = vadd.f32 %v1948, %v2022
  %v2024 = vpop.f32.mrb[0].mxu0
  %2025 = vdwg.mxu0
  %v2026 = vmax.f32 %v2023, 0.0
  %v2027 = vld [vmem:[%s7] sm:$0xff]
  %v2028 = vld [vmem:[%s7 + $0x8] sm:$0xff]
  %v2029 = vld [vmem:[%s7 + $0x10] sm:$0xff]
  %v2030 = vld [vmem:[%s7 + $0x18] sm:$0xff]
  %v2031 = vld [vmem:[%s7 + $0x20] sm:$0xff]
  %v2032 = vld [vmem:[%s7 + $0x28] sm:$0xff]
  %v2033 = vld [vmem:[%s7 + $0x30] sm:$0xff]
  %v2034 = vld [vmem:[%s7 + $0x38] sm:$0xff]
  %v2035 = vld [vmem:[%s7 + $0x40] sm:$0xff]
  %v2036 = vld [vmem:[%s7 + $0x48] sm:$0xff]
  %v2037 = vld [vmem:[%s7 + $0x50] sm:$0xff]
  %v2038 = vld [vmem:[%s7 + $0x58] sm:$0xff]
  %v2039 = vld [vmem:[%s7 + $0x60] sm:$0xff]
  %v2040 = vld [vmem:[%s7 + $0x68] sm:$0xff]
  %v2041 = vld [vmem:[%s7 + $0x70] sm:$0xff]
  %v2042 = vld [vmem:[%s7 + $0x78] sm:$0xff]
  %v2043 = vld [vmem:[#allocation4] sm:$0x1]
  %v2045 = vlaneseq
  %v2046 = vshrl.u32 %v2045, 7
  %v2047 = vsub.s32 0, %v2046
  %v2048 = vrot.slane %v2043, %v2047
  %2050 = vmatprep.subr.mxu0 0.0
  %2051 = vmatpush1.msra.mxu0 %v2027
  %2052 = vmatprep.subr.mxu0 0.0
  %2053 = vmatpush1.msra.mxu0 %v2028
  %2054 = vmatprep.subr.mxu0 0.0
  %2055 = vmatpush1.msra.mxu0 %v2029
  %2056 = vmatprep.subr.mxu0 0.0
  %2057 = vmatpush1.msra.mxu0 %v2030
  %2058 = vmatprep.subr.mxu0 0.0
  %2059 = vmatpush1.msra.mxu0 %v2031
  %2060 = vmatprep.subr.mxu0 0.0
  %2061 = vmatpush1.msra.mxu0 %v2032
  %2062 = vmatprep.subr.mxu0 0.0
  %2063 = vmatpush1.msra.mxu0 %v2033
  %2064 = vmatprep.subr.mxu0 0.0
  %2065 = vmatpush1.msra.mxu0 %v2034
  %2066 = vmatprep.subr.mxu0 0.0
  %2067 = vmatpush1.msra.mxu0 %v2035
  %2068 = vmatprep.subr.mxu0 0.0
  %2069 = vmatpush1.msra.mxu0 %v2036
  %2070 = vmatprep.subr.mxu0 0.0
  %2071 = vmatpush1.msra.mxu0 %v2037
  %2072 = vmatprep.subr.mxu0 0.0
  %2073 = vmatpush1.msra.mxu0 %v2038
  %2074 = vmatprep.subr.mxu0 0.0
  %2075 = vmatpush1.msra.mxu0 %v2039
  %2076 = vmatprep.subr.mxu0 0.0
  %2077 = vmatpush1.msra.mxu0 %v2040
  %2078 = vmatprep.subr.mxu0 0.0
  %2079 = vmatpush1.msra.mxu0 %v2041
  %2080 = vmatprep.subr.mxu0 0.0
  %2081 = vmatpush1.msra.mxu0 %v2042
  %2082 = vmatprep.subr.mxu0 0.0
  %2083 = vmatpush1.msra.mxu0 0.0
  %2084 = vmatprep.subr.mxu0 0.0
  %2085 = vmatpush1.msra.mxu0 0.0
  %2086 = vmatprep.subr.mxu0 0.0
  %2087 = vmatpush1.msra.mxu0 0.0
  %2088 = vmatprep.subr.mxu0 0.0
  %2089 = vmatpush1.msra.mxu0 0.0
  %2090 = vmatprep.subr.mxu0 0.0
  %2091 = vmatpush1.msra.mxu0 0.0
  %2092 = vmatprep.subr.mxu0 0.0
  %2093 = vmatpush1.msra.mxu0 0.0
  %2094 = vmatprep.subr.mxu0 0.0
  %2095 = vmatpush1.msra.mxu0 0.0
  %2096 = vmatprep.subr.mxu0 0.0
  %2097 = vmatpush1.msra.mxu0 0.0
  %2098 = vmatprep.subr.mxu0 0.0
  %2099 = vmatpush1.msra.mxu0 0.0
  %2100 = vmatprep.subr.mxu0 0.0
  %2101 = vmatpush1.msra.mxu0 0.0
  %2102 = vmatprep.subr.mxu0 0.0
  %2103 = vmatpush1.msra.mxu0 0.0
  %2104 = vmatprep.subr.mxu0 0.0
  %2105 = vmatpush1.msra.mxu0 0.0
  %2106 = vmatprep.subr.mxu0 0.0
  %2107 = vmatpush1.msra.mxu0 0.0
  %2108 = vmatprep.subr.mxu0 0.0
  %2109 = vmatpush1.msra.mxu0 0.0
  %2110 = vmatprep.subr.mxu0 0.0
  %2111 = vmatpush1.msra.mxu0 0.0
  %2112 = vmatprep.subr.mxu0 0.0
  %2113 = vmatpush1.msra.mxu0 0.0
  %2114 = vmatprep.mubr.f32.mxu0 0.0
  %2115 = vmatmul.mubr.f32.gmra.mrb[0].mxu0 %v2026
  %v2116 = vpop.f32.mrb[0].mxu0
  %v2117 = vadd.f32 %v2048, %v2116
  %v2118 = vpop.f32.mrb[0].mxu0
  %2119 = vdwg.mxu0
  %v2120 = vxor.u32 %v2117, 2147483648
  %v2121 = vmul.f32 %v2120, 1.442695
  %v2122 = vpow.pop %v2121
  %v2123 = vadd.f32 %v2122, 1.0
  %v2124 = vrcp.pop %v2123
  %v2125 = vmul.f32 1.0, %v2124
  %vm2126 = vcmask 1024
  %2127 = vst.msk [vmem:[%s9] sm:$0x3] %vm2126, %v2125
  // Predicated region
  $region38: #{simple_cnn_forward.1} parent=0 // pred_check
    _
  $region39: #{simple_cnn_forward.1} parent=0 // pred_check_branch
    %2129 = sbr.rel (0) target = $region41
  $region40: #{simple_cnn_forward.1} parent=0 // pred_region
    _
  $region41: #{simple_cnn_forward.1} parent=0 // pred_fallthru
    _
  // Predicated region
  $region42: #{simple_cnn_forward.1} parent=0 // pred_check
    _
  $region43: #{simple_cnn_forward.1} parent=0 // pred_check_branch
    %2131 = sbr.rel (0) target = $region45
  $region44: #{simple_cnn_forward.1} parent=0 // pred_region
    _
  $region45: #{simple_cnn_forward.1} parent=0 // pred_fallthru
    _

</llo_original>
